<compile_context>
chip_gen: v5e
topology: v5e:2x2
jax: 0.10.0
libtpu: 0.0.40
codegen_flags: <defaults>
</compile_context>

<pallas_src>
import functools

import jax
import jax.numpy as jnp
from jax.experimental import pallas as pl
from jax.experimental.pallas import tpu as pltpu

_ROWS_PER_STEP = 8  # output sublanes written per grid step -> (8, 128)-aligned stores


def _uniform_from_index(flat_idx_i32, seed_i32):
    """Counter-based hash PRNG -> uniforms in [0, 1). Pure jnp, TPU + interpret safe."""
    x = flat_idx_i32.astype(jnp.uint32)
    x = x ^ (seed_i32.astype(jnp.uint32) * jnp.uint32(2654435761))   # 0x9E3779B1
    x = x * jnp.uint32(2654435761)
    x = x ^ (x >> jnp.uint32(15))
    x = x * jnp.uint32(2246822519)                                   # 0x85EBCA77
    x = x ^ (x >> jnp.uint32(13))
    x = x * jnp.uint32(3266489917)                                   # 0xC2B2AE3D
    x = x ^ (x >> jnp.uint32(16))
    # top 24 bits -> exact float32 in [0, 1); avoids unsigned-compare pitfalls.
    return (x >> jnp.uint32(8)).astype(jnp.int32).astype(jnp.float32) * jnp.float32(
        1.0 / (1 << 24))


def _token_embed_kernel(ids_ref, seed_ref, *refs, dropout_rate, training,
                        tok_per_row, rows_per_step, embed_dim):
    """Assemble one lane-dense (rows_per_step, tok_per_row*embed_dim) output tile
    from rows_per_step*tok_per_row gathered embedding rows, then apply dropout."""
    del ids_ref  # token ids are consumed by the index_maps only
    table_refs = refs[:-1]
    out_ref = refs[-1]
    lane_w = tok_per_row * embed_dim

    # Pack tok_per_row consecutive tokens side by side along the lane axis.
    rows = []
    for r in range(rows_per_step):
        pieces = [table_refs[r * tok_per_row + c][0] for c in range(tok_per_row)]
        rows.append(pieces[0] if tok_per_row == 1
                    else jnp.concatenate(pieces, axis=-1))            # (1, lane_w)
    tile = rows[0] if rows_per_step == 1 else jnp.concatenate(rows, axis=0)
    tile = tile.astype(jnp.float32)                                   # (rows_per_step, lane_w)

    if training and dropout_rate > 0.0:
        # Inverted dropout; mask differs per element AND per grid tile because the
        # hash input is the global flat element index.
        base = pl.program_id(0) * (rows_per_step * lane_w)
        ridx = jax.lax.broadcasted_iota(jnp.int32, (rows_per_step, lane_w), 0)
        cidx = jax.lax.broadcasted_iota(jnp.int32, (rows_per_step, lane_w), 1)
        u = _uniform_from_index(base + ridx * lane_w + cidx, seed_ref[0])
        keep = u >= jnp.float32(dropout_rate)
        tile = jnp.where(keep, tile * jnp.float32(1.0 / (1.0 - dropout_rate)),
                         jnp.float32(0.0))

    out_ref[...] = tile.astype(out_ref.dtype)


def token_unit_embedder_forward(token_idxs, table, *, dropout_rate=0.1,
                                training=False, seed=0):
    """JAX/Pallas equivalent of TokenUnitEmbedder.forward.

    token_idxs: (B, S) integer token indices
    table:      (V, E) float32 embedding table
    returns:    (1, B, S, E) float32  ==  dropout(embedding(token_idxs)).unsqueeze(0)
    """
    B, S = token_idxs.shape
    V, E = table.shape
    T = B * S

    # Lane packing so the store unit sees a >=128-wide last dimension.
    if E % 128 == 0:
        tok_per_row = 1
    elif 128 % E == 0:
        tok_per_row = 128 // E
    else:
        tok_per_row = 1  # TODO(synk): pad E to a 128 multiple for odd embedding sizes
    lane_w = tok_per_row * E

    tokens_per_step = _ROWS_PER_STEP * tok_per_row
    T_pad = ((T + tokens_per_step - 1) // tokens_per_step) * tokens_per_step
    num_rows = T_pad // tok_per_row
    num_steps = num_rows // _ROWS_PER_STEP

    # Token ids on the scalar path; clamp OOB ids like jnp.take; pad with 0.
    ids = jnp.clip(token_idxs.reshape(-1).astype(jnp.int32), 0, V - 1)
    ids = jnp.pad(ids, (0, T_pad - T))
    seed_arr = jnp.asarray([seed], dtype=jnp.int32)

    # Table viewed as (V, 1, E): block (1, 1, E) keeps the last-two block dims equal
    # to the full array dims while the leading (vocab) dim is gathered per token.
    table3 = table.reshape(V, 1, E)
    G = tokens_per_step  # gather streams (table rows fetched) per grid step

    def _table_spec(j):
        return pl.BlockSpec(
            (1, 1, E),
            lambda i, ids_ref, seed_ref, j=j: (ids_ref[i * G + j], 0, 0))

    kernel = functools.partial(
        _token_embed_kernel,
        dropout_rate=float(dropout_rate), training=bool(training),
        tok_per_row=tok_per_row, rows_per_step=_ROWS_PER_STEP, embed_dim=E)

    packed = pl.pallas_call(
        kernel,
        out_shape=jax.ShapeDtypeStruct((num_rows, lane_w), table.dtype),
        grid_spec=pltpu.PrefetchScalarGridSpec(
            num_scalar_prefetch=2,                        # (ids, seed) -> SMEM
            grid=(num_steps,),
            in_specs=[_table_spec(j) for j in range(G)],  # table stays in HBM; rows DMA'd on demand
            out_specs=pl.BlockSpec((_ROWS_PER_STEP, lane_w),
                                   lambda i, ids_ref, seed_ref: (i, 0)),
        ),
        compiler_params=pltpu.CompilerParams(
            dimension_semantics=("parallel",)),           # v7x: token tiles split across both TCs
    )(ids, seed_arr, *([table3] * G))

    emb = packed.reshape(T_pad, E)[:T].reshape(B, S, E)
    return emb[None, ...]                                 # unsqueeze(0)


if __name__ == "__main__":
    # Small shapes consistent with the module: vocab=64, embed=32, tokens (B=2, S=8).
    V, E = 64, 32
    B, S = 2, 8
    dropout_rate = 0.1

    key = jax.random.PRNGKey(0)
    k_tab, k_ids, k_ids2 = jax.random.split(key, 3)

    # Deterministic xavier_uniform_ init of nn.Embedding(V, E).weight.
    bound = (6.0 / (V + E)) ** 0.5
    table = jax.random.uniform(k_tab, (V, E), dtype=jnp.float32,
                               minval=-bound, maxval=bound)
    token_idxs = jax.random.randint(k_ids, (B, S), 0, V, dtype=jnp.int32)

    # Eval mode (dropout is identity) vs plain JAX embedding lookup.
    out = token_unit_embedder_forward(token_idxs, table,
                                      dropout_rate=dropout_rate, training=False)
    out = jax.block_until_ready(out)
    ref = jnp.take(table, token_idxs, axis=0)[None, ...]
    assert out.shape == (1, B, S, E), out.shape
    assert jnp.allclose(out, ref, atol=1e-6), "mismatch vs reference embedding lookup"

    # Token count that is NOT a multiple of the per-step tile -> exercises padding.
    B2, S2 = 3, 7
    token_idxs2 = jax.random.randint(k_ids2, (B2, S2), 0, V, dtype=jnp.int32)
    out2 = jax.block_until_ready(
        token_unit_embedder_forward(token_idxs2, table, training=False))
    ref2 = jnp.take(table, token_idxs2, axis=0)[None, ...]
    assert out2.shape == (1, B2, S2, E)
    assert jnp.allclose(out2, ref2, atol=1e-6), "padding path mismatch"

    # Training mode: every element must be either dropped (0) or scaled by 1/(1-p).
    out_tr = jax.block_until_ready(
        token_unit_embedder_forward(token_idxs, table,
                                    dropout_rate=dropout_rate, training=True,
                                    seed=123))
    scaled = ref / (1.0 - dropout_rate)
    ok = jnp.logical_or(out_tr == 0.0, jnp.abs(out_tr - scaled) < 1e-5)
    assert bool(jnp.all(ok)), "dropout output is not in {0, x/(1-p)}"

    print("KERNEL_OK")
</pallas_src>

<mosaic_0001>
module attributes {stable_mosaic.version = 11 : i64} {
  func.func @_token_embed_kernel(%arg0: i32, %arg1: memref<32xi32, #tpu.memory_space<smem>>, %arg2: memref<1xi32, #tpu.memory_space<smem>>, %arg3: memref<1x1x32xf32, #tpu.memory_space<vmem>>, %arg4: memref<1x1x32xf32, #tpu.memory_space<vmem>>, %arg5: memref<1x1x32xf32, #tpu.memory_space<vmem>>, %arg6: memref<1x1x32xf32, #tpu.memory_space<vmem>>, %arg7: memref<1x1x32xf32, #tpu.memory_space<vmem>>, %arg8: memref<1x1x32xf32, #tpu.memory_space<vmem>>, %arg9: memref<1x1x32xf32, #tpu.memory_space<vmem>>, %arg10: memref<1x1x32xf32, #tpu.memory_space<vmem>>, %arg11: memref<1x1x32xf32, #tpu.memory_space<vmem>>, %arg12: memref<1x1x32xf32, #tpu.memory_space<vmem>>, %arg13: memref<1x1x32xf32, #tpu.memory_space<vmem>>, %arg14: memref<1x1x32xf32, #tpu.memory_space<vmem>>, %arg15: memref<1x1x32xf32, #tpu.memory_space<vmem>>, %arg16: memref<1x1x32xf32, #tpu.memory_space<vmem>>, %arg17: memref<1x1x32xf32, #tpu.memory_space<vmem>>, %arg18: memref<1x1x32xf32, #tpu.memory_space<vmem>>, %arg19: memref<1x1x32xf32, #tpu.memory_space<vmem>>, %arg20: memref<1x1x32xf32, #tpu.memory_space<vmem>>, %arg21: memref<1x1x32xf32, #tpu.memory_space<vmem>>, %arg22: memref<1x1x32xf32, #tpu.memory_space<vmem>>, %arg23: memref<1x1x32xf32, #tpu.memory_space<vmem>>, %arg24: memref<1x1x32xf32, #tpu.memory_space<vmem>>, %arg25: memref<1x1x32xf32, #tpu.memory_space<vmem>>, %arg26: memref<1x1x32xf32, #tpu.memory_space<vmem>>, %arg27: memref<1x1x32xf32, #tpu.memory_space<vmem>>, %arg28: memref<1x1x32xf32, #tpu.memory_space<vmem>>, %arg29: memref<1x1x32xf32, #tpu.memory_space<vmem>>, %arg30: memref<1x1x32xf32, #tpu.memory_space<vmem>>, %arg31: memref<1x1x32xf32, #tpu.memory_space<vmem>>, %arg32: memref<1x1x32xf32, #tpu.memory_space<vmem>>, %arg33: memref<1x1x32xf32, #tpu.memory_space<vmem>>, %arg34: memref<1x1x32xf32, #tpu.memory_space<vmem>>, %arg35: memref<8x128xf32, #tpu.memory_space<vmem>>) attributes {dimension_semantics = [#tpu.dimension_semantics<parallel>], iteration_bounds = array<i64: 1>, scalar_prefetch = 2 : i64, scratch_operands = 0 : i64, tpu.core_type = #tpu.core_type<tc>, window_params = [{transform_indices = @transform_0, window_bounds = array<i64: 1, 1, 32>}, {transform_indices = @transform_1, window_bounds = array<i64: 1, 1, 32>}, {transform_indices = @transform_2, window_bounds = array<i64: 1, 1, 32>}, {transform_indices = @transform_3, window_bounds = array<i64: 1, 1, 32>}, {transform_indices = @transform_4, window_bounds = array<i64: 1, 1, 32>}, {transform_indices = @transform_5, window_bounds = array<i64: 1, 1, 32>}, {transform_indices = @transform_6, window_bounds = array<i64: 1, 1, 32>}, {transform_indices = @transform_7, window_bounds = array<i64: 1, 1, 32>}, {transform_indices = @transform_8, window_bounds = array<i64: 1, 1, 32>}, {transform_indices = @transform_9, window_bounds = array<i64: 1, 1, 32>}, {transform_indices = @transform_10, window_bounds = array<i64: 1, 1, 32>}, {transform_indices = @transform_11, window_bounds = array<i64: 1, 1, 32>}, {transform_indices = @transform_12, window_bounds = array<i64: 1, 1, 32>}, {transform_indices = @transform_13, window_bounds = array<i64: 1, 1, 32>}, {transform_indices = @transform_14, window_bounds = array<i64: 1, 1, 32>}, {transform_indices = @transform_15, window_bounds = array<i64: 1, 1, 32>}, {transform_indices = @transform_16, window_bounds = array<i64: 1, 1, 32>}, {transform_indices = @transform_17, window_bounds = array<i64: 1, 1, 32>}, {transform_indices = @transform_18, window_bounds = array<i64: 1, 1, 32>}, {transform_indices = @transform_19, window_bounds = array<i64: 1, 1, 32>}, {transform_indices = @transform_20, window_bounds = array<i64: 1, 1, 32>}, {transform_indices = @transform_21, window_bounds = array<i64: 1, 1, 32>}, {transform_indices = @transform_22, window_bounds = array<i64: 1, 1, 32>}, {transform_indices = @transform_23, window_bounds = array<i64: 1, 1, 32>}, {transform_indices = @transform_24, window_bounds = array<i64: 1, 1, 32>}, {transform_indices = @transform_25, window_bounds = array<i64: 1, 1, 32>}, {transform_indices = @transform_26, window_bounds = array<i64: 1, 1, 32>}, {transform_indices = @transform_27, window_bounds = array<i64: 1, 1, 32>}, {transform_indices = @transform_28, window_bounds = array<i64: 1, 1, 32>}, {transform_indices = @transform_29, window_bounds = array<i64: 1, 1, 32>}, {transform_indices = @transform_30, window_bounds = array<i64: 1, 1, 32>}, {transform_indices = @transform_31, window_bounds = array<i64: 1, 1, 32>}, {transform_indices = @transform_32, window_bounds = array<i64: 8, 128>}]} {
    %c0 = arith.constant 0 : index
    %c0_0 = arith.constant 0 : index
    %c0_1 = arith.constant 0 : index
    %0 = vector.load %arg3[%c0, %c0_0, %c0_1] : memref<1x1x32xf32, #tpu.memory_space<vmem>>, vector<1x1x32xf32>
    %1 = vector.shape_cast %0 : vector<1x1x32xf32> to vector<1x32xf32>
    %c0_2 = arith.constant 0 : index
    %c0_3 = arith.constant 0 : index
    %c0_4 = arith.constant 0 : index
    %2 = vector.load %arg4[%c0_2, %c0_3, %c0_4] : memref<1x1x32xf32, #tpu.memory_space<vmem>>, vector<1x1x32xf32>
    %3 = vector.shape_cast %2 : vector<1x1x32xf32> to vector<1x32xf32>
    %c0_5 = arith.constant 0 : index
    %c0_6 = arith.constant 0 : index
    %c0_7 = arith.constant 0 : index
    %4 = vector.load %arg5[%c0_5, %c0_6, %c0_7] : memref<1x1x32xf32, #tpu.memory_space<vmem>>, vector<1x1x32xf32>
    %5 = vector.shape_cast %4 : vector<1x1x32xf32> to vector<1x32xf32>
    %c0_8 = arith.constant 0 : index
    %c0_9 = arith.constant 0 : index
    %c0_10 = arith.constant 0 : index
    %6 = vector.load %arg6[%c0_8, %c0_9, %c0_10] : memref<1x1x32xf32, #tpu.memory_space<vmem>>, vector<1x1x32xf32>
    %7 = vector.shape_cast %6 : vector<1x1x32xf32> to vector<1x32xf32>
    %8 = tpu.concatenate %1, %3, %5, %7 in 1 : vector<1x32xf32>, vector<1x32xf32>, vector<1x32xf32>, vector<1x32xf32> -> vector<1x128xf32>
    %c0_11 = arith.constant 0 : index
    %c0_12 = arith.constant 0 : index
    %c0_13 = arith.constant 0 : index
    %9 = vector.load %arg7[%c0_11, %c0_12, %c0_13] : memref<1x1x32xf32, #tpu.memory_space<vmem>>, vector<1x1x32xf32>
    %10 = vector.shape_cast %9 : vector<1x1x32xf32> to vector<1x32xf32>
    %c0_14 = arith.constant 0 : index
    %c0_15 = arith.constant 0 : index
    %c0_16 = arith.constant 0 : index
    %11 = vector.load %arg8[%c0_14, %c0_15, %c0_16] : memref<1x1x32xf32, #tpu.memory_space<vmem>>, vector<1x1x32xf32>
    %12 = vector.shape_cast %11 : vector<1x1x32xf32> to vector<1x32xf32>
    %c0_17 = arith.constant 0 : index
    %c0_18 = arith.constant 0 : index
    %c0_19 = arith.constant 0 : index
    %13 = vector.load %arg9[%c0_17, %c0_18, %c0_19] : memref<1x1x32xf32, #tpu.memory_space<vmem>>, vector<1x1x32xf32>
    %14 = vector.shape_cast %13 : vector<1x1x32xf32> to vector<1x32xf32>
    %c0_20 = arith.constant 0 : index
    %c0_21 = arith.constant 0 : index
    %c0_22 = arith.constant 0 : index
    %15 = vector.load %arg10[%c0_20, %c0_21, %c0_22] : memref<1x1x32xf32, #tpu.memory_space<vmem>>, vector<1x1x32xf32>
    %16 = vector.shape_cast %15 : vector<1x1x32xf32> to vector<1x32xf32>
    %17 = tpu.concatenate %10, %12, %14, %16 in 1 : vector<1x32xf32>, vector<1x32xf32>, vector<1x32xf32>, vector<1x32xf32> -> vector<1x128xf32>
    %c0_23 = arith.constant 0 : index
    %c0_24 = arith.constant 0 : index
    %c0_25 = arith.constant 0 : index
    %18 = vector.load %arg11[%c0_23, %c0_24, %c0_25] : memref<1x1x32xf32, #tpu.memory_space<vmem>>, vector<1x1x32xf32>
    %19 = vector.shape_cast %18 : vector<1x1x32xf32> to vector<1x32xf32>
    %c0_26 = arith.constant 0 : index
    %c0_27 = arith.constant 0 : index
    %c0_28 = arith.constant 0 : index
    %20 = vector.load %arg12[%c0_26, %c0_27, %c0_28] : memref<1x1x32xf32, #tpu.memory_space<vmem>>, vector<1x1x32xf32>
    %21 = vector.shape_cast %20 : vector<1x1x32xf32> to vector<1x32xf32>
    %c0_29 = arith.constant 0 : index
    %c0_30 = arith.constant 0 : index
    %c0_31 = arith.constant 0 : index
    %22 = vector.load %arg13[%c0_29, %c0_30, %c0_31] : memref<1x1x32xf32, #tpu.memory_space<vmem>>, vector<1x1x32xf32>
    %23 = vector.shape_cast %22 : vector<1x1x32xf32> to vector<1x32xf32>
    %c0_32 = arith.constant 0 : index
    %c0_33 = arith.constant 0 : index
    %c0_34 = arith.constant 0 : index
    %24 = vector.load %arg14[%c0_32, %c0_33, %c0_34] : memref<1x1x32xf32, #tpu.memory_space<vmem>>, vector<1x1x32xf32>
    %25 = vector.shape_cast %24 : vector<1x1x32xf32> to vector<1x32xf32>
    %26 = tpu.concatenate %19, %21, %23, %25 in 1 : vector<1x32xf32>, vector<1x32xf32>, vector<1x32xf32>, vector<1x32xf32> -> vector<1x128xf32>
    %c0_35 = arith.constant 0 : index
    %c0_36 = arith.constant 0 : index
    %c0_37 = arith.constant 0 : index
    %27 = vector.load %arg15[%c0_35, %c0_36, %c0_37] : memref<1x1x32xf32, #tpu.memory_space<vmem>>, vector<1x1x32xf32>
    %28 = vector.shape_cast %27 : vector<1x1x32xf32> to vector<1x32xf32>
    %c0_38 = arith.constant 0 : index
    %c0_39 = arith.constant 0 : index
    %c0_40 = arith.constant 0 : index
    %29 = vector.load %arg16[%c0_38, %c0_39, %c0_40] : memref<1x1x32xf32, #tpu.memory_space<vmem>>, vector<1x1x32xf32>
    %30 = vector.shape_cast %29 : vector<1x1x32xf32> to vector<1x32xf32>
    %c0_41 = arith.constant 0 : index
    %c0_42 = arith.constant 0 : index
    %c0_43 = arith.constant 0 : index
    %31 = vector.load %arg17[%c0_41, %c0_42, %c0_43] : memref<1x1x32xf32, #tpu.memory_space<vmem>>, vector<1x1x32xf32>
    %32 = vector.shape_cast %31 : vector<1x1x32xf32> to vector<1x32xf32>
    %c0_44 = arith.constant 0 : index
    %c0_45 = arith.constant 0 : index
    %c0_46 = arith.constant 0 : index
    %33 = vector.load %arg18[%c0_44, %c0_45, %c0_46] : memref<1x1x32xf32, #tpu.memory_space<vmem>>, vector<1x1x32xf32>
    %34 = vector.shape_cast %33 : vector<1x1x32xf32> to vector<1x32xf32>
    %35 = tpu.concatenate %28, %30, %32, %34 in 1 : vector<1x32xf32>, vector<1x32xf32>, vector<1x32xf32>, vector<1x32xf32> -> vector<1x128xf32>
    %c0_47 = arith.constant 0 : index
    %c0_48 = arith.constant 0 : index
    %c0_49 = arith.constant 0 : index
    %36 = vector.load %arg19[%c0_47, %c0_48, %c0_49] : memref<1x1x32xf32, #tpu.memory_space<vmem>>, vector<1x1x32xf32>
    %37 = vector.shape_cast %36 : vector<1x1x32xf32> to vector<1x32xf32>
    %c0_50 = arith.constant 0 : index
    %c0_51 = arith.constant 0 : index
    %c0_52 = arith.constant 0 : index
    %38 = vector.load %arg20[%c0_50, %c0_51, %c0_52] : memref<1x1x32xf32, #tpu.memory_space<vmem>>, vector<1x1x32xf32>
    %39 = vector.shape_cast %38 : vector<1x1x32xf32> to vector<1x32xf32>
    %c0_53 = arith.constant 0 : index
    %c0_54 = arith.constant 0 : index
    %c0_55 = arith.constant 0 : index
    %40 = vector.load %arg21[%c0_53, %c0_54, %c0_55] : memref<1x1x32xf32, #tpu.memory_space<vmem>>, vector<1x1x32xf32>
    %41 = vector.shape_cast %40 : vector<1x1x32xf32> to vector<1x32xf32>
    %c0_56 = arith.constant 0 : index
    %c0_57 = arith.constant 0 : index
    %c0_58 = arith.constant 0 : index
    %42 = vector.load %arg22[%c0_56, %c0_57, %c0_58] : memref<1x1x32xf32, #tpu.memory_space<vmem>>, vector<1x1x32xf32>
    %43 = vector.shape_cast %42 : vector<1x1x32xf32> to vector<1x32xf32>
    %44 = tpu.concatenate %37, %39, %41, %43 in 1 : vector<1x32xf32>, vector<1x32xf32>, vector<1x32xf32>, vector<1x32xf32> -> vector<1x128xf32>
    %c0_59 = arith.constant 0 : index
    %c0_60 = arith.constant 0 : index
    %c0_61 = arith.constant 0 : index
    %45 = vector.load %arg23[%c0_59, %c0_60, %c0_61] : memref<1x1x32xf32, #tpu.memory_space<vmem>>, vector<1x1x32xf32>
    %46 = vector.shape_cast %45 : vector<1x1x32xf32> to vector<1x32xf32>
    %c0_62 = arith.constant 0 : index
    %c0_63 = arith.constant 0 : index
    %c0_64 = arith.constant 0 : index
    %47 = vector.load %arg24[%c0_62, %c0_63, %c0_64] : memref<1x1x32xf32, #tpu.memory_space<vmem>>, vector<1x1x32xf32>
    %48 = vector.shape_cast %47 : vector<1x1x32xf32> to vector<1x32xf32>
    %c0_65 = arith.constant 0 : index
    %c0_66 = arith.constant 0 : index
    %c0_67 = arith.constant 0 : index
    %49 = vector.load %arg25[%c0_65, %c0_66, %c0_67] : memref<1x1x32xf32, #tpu.memory_space<vmem>>, vector<1x1x32xf32>
    %50 = vector.shape_cast %49 : vector<1x1x32xf32> to vector<1x32xf32>
    %c0_68 = arith.constant 0 : index
    %c0_69 = arith.constant 0 : index
    %c0_70 = arith.constant 0 : index
    %51 = vector.load %arg26[%c0_68, %c0_69, %c0_70] : memref<1x1x32xf32, #tpu.memory_space<vmem>>, vector<1x1x32xf32>
    %52 = vector.shape_cast %51 : vector<1x1x32xf32> to vector<1x32xf32>
    %53 = tpu.concatenate %46, %48, %50, %52 in 1 : vector<1x32xf32>, vector<1x32xf32>, vector<1x32xf32>, vector<1x32xf32> -> vector<1x128xf32>
    %c0_71 = arith.constant 0 : index
    %c0_72 = arith.constant 0 : index
    %c0_73 = arith.constant 0 : index
    %54 = vector.load %arg27[%c0_71, %c0_72, %c0_73] : memref<1x1x32xf32, #tpu.memory_space<vmem>>, vector<1x1x32xf32>
    %55 = vector.shape_cast %54 : vector<1x1x32xf32> to vector<1x32xf32>
    %c0_74 = arith.constant 0 : index
    %c0_75 = arith.constant 0 : index
    %c0_76 = arith.constant 0 : index
    %56 = vector.load %arg28[%c0_74, %c0_75, %c0_76] : memref<1x1x32xf32, #tpu.memory_space<vmem>>, vector<1x1x32xf32>
    %57 = vector.shape_cast %56 : vector<1x1x32xf32> to vector<1x32xf32>
    %c0_77 = arith.constant 0 : index
    %c0_78 = arith.constant 0 : index
    %c0_79 = arith.constant 0 : index
    %58 = vector.load %arg29[%c0_77, %c0_78, %c0_79] : memref<1x1x32xf32, #tpu.memory_space<vmem>>, vector<1x1x32xf32>
    %59 = vector.shape_cast %58 : vector<1x1x32xf32> to vector<1x32xf32>
    %c0_80 = arith.constant 0 : index
    %c0_81 = arith.constant 0 : index
    %c0_82 = arith.constant 0 : index
    %60 = vector.load %arg30[%c0_80, %c0_81, %c0_82] : memref<1x1x32xf32, #tpu.memory_space<vmem>>, vector<1x1x32xf32>
    %61 = vector.shape_cast %60 : vector<1x1x32xf32> to vector<1x32xf32>
    %62 = tpu.concatenate %55, %57, %59, %61 in 1 : vector<1x32xf32>, vector<1x32xf32>, vector<1x32xf32>, vector<1x32xf32> -> vector<1x128xf32>
    %c0_83 = arith.constant 0 : index
    %c0_84 = arith.constant 0 : index
    %c0_85 = arith.constant 0 : index
    %63 = vector.load %arg31[%c0_83, %c0_84, %c0_85] : memref<1x1x32xf32, #tpu.memory_space<vmem>>, vector<1x1x32xf32>
    %64 = vector.shape_cast %63 : vector<1x1x32xf32> to vector<1x32xf32>
    %c0_86 = arith.constant 0 : index
    %c0_87 = arith.constant 0 : index
    %c0_88 = arith.constant 0 : index
    %65 = vector.load %arg32[%c0_86, %c0_87, %c0_88] : memref<1x1x32xf32, #tpu.memory_space<vmem>>, vector<1x1x32xf32>
    %66 = vector.shape_cast %65 : vector<1x1x32xf32> to vector<1x32xf32>
    %c0_89 = arith.constant 0 : index
    %c0_90 = arith.constant 0 : index
    %c0_91 = arith.constant 0 : index
    %67 = vector.load %arg33[%c0_89, %c0_90, %c0_91] : memref<1x1x32xf32, #tpu.memory_space<vmem>>, vector<1x1x32xf32>
    %68 = vector.shape_cast %67 : vector<1x1x32xf32> to vector<1x32xf32>
    %c0_92 = arith.constant 0 : index
    %c0_93 = arith.constant 0 : index
    %c0_94 = arith.constant 0 : index
    %69 = vector.load %arg34[%c0_92, %c0_93, %c0_94] : memref<1x1x32xf32, #tpu.memory_space<vmem>>, vector<1x1x32xf32>
    %70 = vector.shape_cast %69 : vector<1x1x32xf32> to vector<1x32xf32>
    %71 = tpu.concatenate %64, %66, %68, %70 in 1 : vector<1x32xf32>, vector<1x32xf32>, vector<1x32xf32>, vector<1x32xf32> -> vector<1x128xf32>
    %72 = tpu.concatenate %8, %17, %26, %35, %44, %53, %62, %71 in 0 : vector<1x128xf32>, vector<1x128xf32>, vector<1x128xf32>, vector<1x128xf32>, vector<1x128xf32>, vector<1x128xf32>, vector<1x128xf32>, vector<1x128xf32> -> vector<8x128xf32>
    %c0_95 = arith.constant 0 : index
    %c0_96 = arith.constant 0 : index
    %73 = vector.load %arg35[%c0_95, %c0_96] : memref<8x128xf32, #tpu.memory_space<vmem>>, vector<8x128xf32>
    tpu.vector_store %arg35[%c0_95, %c0_96], %72 {strides = array<i32>} : memref<8x128xf32, #tpu.memory_space<vmem>>, vector<8x128xf32>,
    return
  }
  func.func @transform_0(%arg0: i32, %arg1: memref<32xi32, #tpu.memory_space<smem>>, %arg2: memref<1xi32, #tpu.memory_space<smem>>) -> (i32, i32, i32) {
    %c32_i32 = arith.constant 32 : i32
    %0 = arith.muli %arg0, %c32_i32 : i32
    %c0_i32 = arith.constant 0 : i32
    %1 = arith.addi %0, %c0_i32 : i32
    %2 = arith.index_cast %1 : i32 to index
    %3 = memref.load %arg1[%2] : memref<32xi32, #tpu.memory_space<smem>>
    %c0_i32_0 = arith.constant 0 : i32
    %c0_i32_1 = arith.constant 0 : i32
    %c0_i32_2 = arith.constant 0 : i32
    return %3, %c0_i32_0, %c0_i32_1 : i32, i32, i32
  }
  func.func @transform_1(%arg0: i32, %arg1: memref<32xi32, #tpu.memory_space<smem>>, %arg2: memref<1xi32, #tpu.memory_space<smem>>) -> (i32, i32, i32) {
    %c32_i32 = arith.constant 32 : i32
    %0 = arith.muli %arg0, %c32_i32 : i32
    %c1_i32 = arith.constant 1 : i32
    %1 = arith.addi %0, %c1_i32 : i32
    %2 = arith.index_cast %1 : i32 to index
    %3 = memref.load %arg1[%2] : memref<32xi32, #tpu.memory_space<smem>>
    %c0_i32 = arith.constant 0 : i32
    %c0_i32_0 = arith.constant 0 : i32
    %c0_i32_1 = arith.constant 0 : i32
    return %3, %c0_i32, %c0_i32_0 : i32, i32, i32
  }
  func.func @transform_2(%arg0: i32, %arg1: memref<32xi32, #tpu.memory_space<smem>>, %arg2: memref<1xi32, #tpu.memory_space<smem>>) -> (i32, i32, i32) {
    %c32_i32 = arith.constant 32 : i32
    %0 = arith.muli %arg0, %c32_i32 : i32
    %c2_i32 = arith.constant 2 : i32
    %1 = arith.addi %0, %c2_i32 : i32
    %2 = arith.index_cast %1 : i32 to index
    %3 = memref.load %arg1[%2] : memref<32xi32, #tpu.memory_space<smem>>
    %c0_i32 = arith.constant 0 : i32
    %c0_i32_0 = arith.constant 0 : i32
    %c0_i32_1 = arith.constant 0 : i32
    return %3, %c0_i32, %c0_i32_0 : i32, i32, i32
  }
  func.func @transform_3(%arg0: i32, %arg1: memref<32xi32, #tpu.memory_space<smem>>, %arg2: memref<1xi32, #tpu.memory_space<smem>>) -> (i32, i32, i32) {
    %c32_i32 = arith.constant 32 : i32
    %0 = arith.muli %arg0, %c32_i32 : i32
    %c3_i32 = arith.constant 3 : i32
    %1 = arith.addi %0, %c3_i32 : i32
    %2 = arith.index_cast %1 : i32 to index
    %3 = memref.load %arg1[%2] : memref<32xi32, #tpu.memory_space<smem>>
    %c0_i32 = arith.constant 0 : i32
    %c0_i32_0 = arith.constant 0 : i32
    %c0_i32_1 = arith.constant 0 : i32
    return %3, %c0_i32, %c0_i32_0 : i32, i32, i32
  }
  func.func @transform_4(%arg0: i32, %arg1: memref<32xi32, #tpu.memory_space<smem>>, %arg2: memref<1xi32, #tpu.memory_space<smem>>) -> (i32, i32, i32) {
    %c32_i32 = arith.constant 32 : i32
    %0 = arith.muli %arg0, %c32_i32 : i32
    %c4_i32 = arith.constant 4 : i32
    %1 = arith.addi %0, %c4_i32 : i32
    %2 = arith.index_cast %1 : i32 to index
    %3 = memref.load %arg1[%2] : memref<32xi32, #tpu.memory_space<smem>>
    %c0_i32 = arith.constant 0 : i32
    %c0_i32_0 = arith.constant 0 : i32
    %c0_i32_1 = arith.constant 0 : i32
    return %3, %c0_i32, %c0_i32_0 : i32, i32, i32
  }
  func.func @transform_5(%arg0: i32, %arg1: memref<32xi32, #tpu.memory_space<smem>>, %arg2: memref<1xi32, #tpu.memory_space<smem>>) -> (i32, i32, i32) {
    %c32_i32 = arith.constant 32 : i32
    %0 = arith.muli %arg0, %c32_i32 : i32
    %c5_i32 = arith.constant 5 : i32
    %1 = arith.addi %0, %c5_i32 : i32
    %2 = arith.index_cast %1 : i32 to index
    %3 = memref.load %arg1[%2] : memref<32xi32, #tpu.memory_space<smem>>
    %c0_i32 = arith.constant 0 : i32
    %c0_i32_0 = arith.constant 0 : i32
    %c0_i32_1 = arith.constant 0 : i32
    return %3, %c0_i32, %c0_i32_0 : i32, i32, i32
  }
  func.func @transform_6(%arg0: i32, %arg1: memref<32xi32, #tpu.memory_space<smem>>, %arg2: memref<1xi32, #tpu.memory_space<smem>>) -> (i32, i32, i32) {
    %c32_i32 = arith.constant 32 : i32
    %0 = arith.muli %arg0, %c32_i32 : i32
    %c6_i32 = arith.constant 6 : i32
    %1 = arith.addi %0, %c6_i32 : i32
    %2 = arith.index_cast %1 : i32 to index
    %3 = memref.load %arg1[%2] : memref<32xi32, #tpu.memory_space<smem>>
    %c0_i32 = arith.constant 0 : i32
    %c0_i32_0 = arith.constant 0 : i32
    %c0_i32_1 = arith.constant 0 : i32
    return %3, %c0_i32, %c0_i32_0 : i32, i32, i32
  }
  func.func @transform_7(%arg0: i32, %arg1: memref<32xi32, #tpu.memory_space<smem>>, %arg2: memref<1xi32, #tpu.memory_space<smem>>) -> (i32, i32, i32) {
    %c32_i32 = arith.constant 32 : i32
    %0 = arith.muli %arg0, %c32_i32 : i32
    %c7_i32 = arith.constant 7 : i32
    %1 = arith.addi %0, %c7_i32 : i32
    %2 = arith.index_cast %1 : i32 to index
    %3 = memref.load %arg1[%2] : memref<32xi32, #tpu.memory_space<smem>>
    %c0_i32 = arith.constant 0 : i32
    %c0_i32_0 = arith.constant 0 : i32
    %c0_i32_1 = arith.constant 0 : i32
    return %3, %c0_i32, %c0_i32_0 : i32, i32, i32
  }
  func.func @transform_8(%arg0: i32, %arg1: memref<32xi32, #tpu.memory_space<smem>>, %arg2: memref<1xi32, #tpu.memory_space<smem>>) -> (i32, i32, i32) {
    %c32_i32 = arith.constant 32 : i32
    %0 = arith.muli %arg0, %c32_i32 : i32
    %c8_i32 = arith.constant 8 : i32
    %1 = arith.addi %0, %c8_i32 : i32
    %2 = arith.index_cast %1 : i32 to index
    %3 = memref.load %arg1[%2] : memref<32xi32, #tpu.memory_space<smem>>
    %c0_i32 = arith.constant 0 : i32
    %c0_i32_0 = arith.constant 0 : i32
    %c0_i32_1 = arith.constant 0 : i32
    return %3, %c0_i32, %c0_i32_0 : i32, i32, i32
  }
  func.func @transform_9(%arg0: i32, %arg1: memref<32xi32, #tpu.memory_space<smem>>, %arg2: memref<1xi32, #tpu.memory_space<smem>>) -> (i32, i32, i32) {
    %c32_i32 = arith.constant 32 : i32
    %0 = arith.muli %arg0, %c32_i32 : i32
    %c9_i32 = arith.constant 9 : i32
    %1 = arith.addi %0, %c9_i32 : i32
    %2 = arith.index_cast %1 : i32 to index
    %3 = memref.load %arg1[%2] : memref<32xi32, #tpu.memory_space<smem>>
    %c0_i32 = arith.constant 0 : i32
    %c0_i32_0 = arith.constant 0 : i32
    %c0_i32_1 = arith.constant 0 : i32
    return %3, %c0_i32, %c0_i32_0 : i32, i32, i32
  }
  func.func @transform_10(%arg0: i32, %arg1: memref<32xi32, #tpu.memory_space<smem>>, %arg2: memref<1xi32, #tpu.memory_space<smem>>) -> (i32, i32, i32) {
    %c32_i32 = arith.constant 32 : i32
    %0 = arith.muli %arg0, %c32_i32 : i32
    %c10_i32 = arith.constant 10 : i32
    %1 = arith.addi %0, %c10_i32 : i32
    %2 = arith.index_cast %1 : i32 to index
    %3 = memref.load %arg1[%2] : memref<32xi32, #tpu.memory_space<smem>>
    %c0_i32 = arith.constant 0 : i32
    %c0_i32_0 = arith.constant 0 : i32
    %c0_i32_1 = arith.constant 0 : i32
    return %3, %c0_i32, %c0_i32_0 : i32, i32, i32
  }
  func.func @transform_11(%arg0: i32, %arg1: memref<32xi32, #tpu.memory_space<smem>>, %arg2: memref<1xi32, #tpu.memory_space<smem>>) -> (i32, i32, i32) {
    %c32_i32 = arith.constant 32 : i32
    %0 = arith.muli %arg0, %c32_i32 : i32
    %c11_i32 = arith.constant 11 : i32
    %1 = arith.addi %0, %c11_i32 : i32
    %2 = arith.index_cast %1 : i32 to index
    %3 = memref.load %arg1[%2] : memref<32xi32, #tpu.memory_space<smem>>
    %c0_i32 = arith.constant 0 : i32
    %c0_i32_0 = arith.constant 0 : i32
    %c0_i32_1 = arith.constant 0 : i32
    return %3, %c0_i32, %c0_i32_0 : i32, i32, i32
  }
  func.func @transform_12(%arg0: i32, %arg1: memref<32xi32, #tpu.memory_space<smem>>, %arg2: memref<1xi32, #tpu.memory_space<smem>>) -> (i32, i32, i32) {
    %c32_i32 = arith.constant 32 : i32
    %0 = arith.muli %arg0, %c32_i32 : i32
    %c12_i32 = arith.constant 12 : i32
    %1 = arith.addi %0, %c12_i32 : i32
    %2 = arith.index_cast %1 : i32 to index
    %3 = memref.load %arg1[%2] : memref<32xi32, #tpu.memory_space<smem>>
    %c0_i32 = arith.constant 0 : i32
    %c0_i32_0 = arith.constant 0 : i32
    %c0_i32_1 = arith.constant 0 : i32
    return %3, %c0_i32, %c0_i32_0 : i32, i32, i32
  }
  func.func @transform_13(%arg0: i32, %arg1: memref<32xi32, #tpu.memory_space<smem>>, %arg2: memref<1xi32, #tpu.memory_space<smem>>) -> (i32, i32, i32) {
    %c32_i32 = arith.constant 32 : i32
    %0 = arith.muli %arg0, %c32_i32 : i32
    %c13_i32 = arith.constant 13 : i32
    %1 = arith.addi %0, %c13_i32 : i32
    %2 = arith.index_cast %1 : i32 to index
    %3 = memref.load %arg1[%2] : memref<32xi32, #tpu.memory_space<smem>>
    %c0_i32 = arith.constant 0 : i32
    %c0_i32_0 = arith.constant 0 : i32
    %c0_i32_1 = arith.constant 0 : i32
    return %3, %c0_i32, %c0_i32_0 : i32, i32, i32
  }
  func.func @transform_14(%arg0: i32, %arg1: memref<32xi32, #tpu.memory_space<smem>>, %arg2: memref<1xi32, #tpu.memory_space<smem>>) -> (i32, i32, i32) {
    %c32_i32 = arith.constant 32 : i32
    %0 = arith.muli %arg0, %c32_i32 : i32
    %c14_i32 = arith.constant 14 : i32
    %1 = arith.addi %0, %c14_i32 : i32
    %2 = arith.index_cast %1 : i32 to index
    %3 = memref.load %arg1[%2] : memref<32xi32, #tpu.memory_space<smem>>
    %c0_i32 = arith.constant 0 : i32
    %c0_i32_0 = arith.constant 0 : i32
    %c0_i32_1 = arith.constant 0 : i32
    return %3, %c0_i32, %c0_i32_0 : i32, i32, i32
  }
  func.func @transform_15(%arg0: i32, %arg1: memref<32xi32, #tpu.memory_space<smem>>, %arg2: memref<1xi32, #tpu.memory_space<smem>>) -> (i32, i32, i32) {
    %c32_i32 = arith.constant 32 : i32
    %0 = arith.muli %arg0, %c32_i32 : i32
    %c15_i32 = arith.constant 15 : i32
    %1 = arith.addi %0, %c15_i32 : i32
    %2 = arith.index_cast %1 : i32 to index
    %3 = memref.load %arg1[%2] : memref<32xi32, #tpu.memory_space<smem>>
    %c0_i32 = arith.constant 0 : i32
    %c0_i32_0 = arith.constant 0 : i32
    %c0_i32_1 = arith.constant 0 : i32
    return %3, %c0_i32, %c0_i32_0 : i32, i32, i32
  }
  func.func @transform_16(%arg0: i32, %arg1: memref<32xi32, #tpu.memory_space<smem>>, %arg2: memref<1xi32, #tpu.memory_space<smem>>) -> (i32, i32, i32) {
    %c32_i32 = arith.constant 32 : i32
    %0 = arith.muli %arg0, %c32_i32 : i32
    %c16_i32 = arith.constant 16 : i32
    %1 = arith.addi %0, %c16_i32 : i32
    %2 = arith.index_cast %1 : i32 to index
    %3 = memref.load %arg1[%2] : memref<32xi32, #tpu.memory_space<smem>>
    %c0_i32 = arith.constant 0 : i32
    %c0_i32_0 = arith.constant 0 : i32
    %c0_i32_1 = arith.constant 0 : i32
    return %3, %c0_i32, %c0_i32_0 : i32, i32, i32
  }
  func.func @transform_17(%arg0: i32, %arg1: memref<32xi32, #tpu.memory_space<smem>>, %arg2: memref<1xi32, #tpu.memory_space<smem>>) -> (i32, i32, i32) {
    %c32_i32 = arith.constant 32 : i32
    %0 = arith.muli %arg0, %c32_i32 : i32
    %c17_i32 = arith.constant 17 : i32
    %1 = arith.addi %0, %c17_i32 : i32
    %2 = arith.index_cast %1 : i32 to index
    %3 = memref.load %arg1[%2] : memref<32xi32, #tpu.memory_space<smem>>
    %c0_i32 = arith.constant 0 : i32
    %c0_i32_0 = arith.constant 0 : i32
    %c0_i32_1 = arith.constant 0 : i32
    return %3, %c0_i32, %c0_i32_0 : i32, i32, i32
  }
  func.func @transform_18(%arg0: i32, %arg1: memref<32xi32, #tpu.memory_space<smem>>, %arg2: memref<1xi32, #tpu.memory_space<smem>>) -> (i32, i32, i32) {
    %c32_i32 = arith.constant 32 : i32
    %0 = arith.muli %arg0, %c32_i32 : i32
    %c18_i32 = arith.constant 18 : i32
    %1 = arith.addi %0, %c18_i32 : i32
    %2 = arith.index_cast %1 : i32 to index
    %3 = memref.load %arg1[%2] : memref<32xi32, #tpu.memory_space<smem>>
    %c0_i32 = arith.constant 0 : i32
    %c0_i32_0 = arith.constant 0 : i32
    %c0_i32_1 = arith.constant 0 : i32
    return %3, %c0_i32, %c0_i32_0 : i32, i32, i32
  }
  func.func @transform_19(%arg0: i32, %arg1: memref<32xi32, #tpu.memory_space<smem>>, %arg2: memref<1xi32, #tpu.memory_space<smem>>) -> (i32, i32, i32) {
    %c32_i32 = arith.constant 32 : i32
    %0 = arith.muli %arg0, %c32_i32 : i32
    %c19_i32 = arith.constant 19 : i32
    %1 = arith.addi %0, %c19_i32 : i32
    %2 = arith.index_cast %1 : i32 to index
    %3 = memref.load %arg1[%2] : memref<32xi32, #tpu.memory_space<smem>>
    %c0_i32 = arith.constant 0 : i32
    %c0_i32_0 = arith.constant 0 : i32
    %c0_i32_1 = arith.constant 0 : i32
    return %3, %c0_i32, %c0_i32_0 : i32, i32, i32
  }
  func.func @transform_20(%arg0: i32, %arg1: memref<32xi32, #tpu.memory_space<smem>>, %arg2: memref<1xi32, #tpu.memory_space<smem>>) -> (i32, i32, i32) {
    %c32_i32 = arith.constant 32 : i32
    %0 = arith.muli %arg0, %c32_i32 : i32
    %c20_i32 = arith.constant 20 : i32
    %1 = arith.addi %0, %c20_i32 : i32
    %2 = arith.index_cast %1 : i32 to index
    %3 = memref.load %arg1[%2] : memref<32xi32, #tpu.memory_space<smem>>
    %c0_i32 = arith.constant 0 : i32
    %c0_i32_0 = arith.constant 0 : i32
    %c0_i32_1 = arith.constant 0 : i32
    return %3, %c0_i32, %c0_i32_0 : i32, i32, i32
  }
  func.func @transform_21(%arg0: i32, %arg1: memref<32xi32, #tpu.memory_space<smem>>, %arg2: memref<1xi32, #tpu.memory_space<smem>>) -> (i32, i32, i32) {
    %c32_i32 = arith.constant 32 : i32
    %0 = arith.muli %arg0, %c32_i32 : i32
    %c21_i32 = arith.constant 21 : i32
    %1 = arith.addi %0, %c21_i32 : i32
    %2 = arith.index_cast %1 : i32 to index
    %3 = memref.load %arg1[%2] : memref<32xi32, #tpu.memory_space<smem>>
    %c0_i32 = arith.constant 0 : i32
    %c0_i32_0 = arith.constant 0 : i32
    %c0_i32_1 = arith.constant 0 : i32
    return %3, %c0_i32, %c0_i32_0 : i32, i32, i32
  }
  func.func @transform_22(%arg0: i32, %arg1: memref<32xi32, #tpu.memory_space<smem>>, %arg2: memref<1xi32, #tpu.memory_space<smem>>) -> (i32, i32, i32) {
    %c32_i32 = arith.constant 32 : i32
    %0 = arith.muli %arg0, %c32_i32 : i32
    %c22_i32 = arith.constant 22 : i32
    %1 = arith.addi %0, %c22_i32 : i32
    %2 = arith.index_cast %1 : i32 to index
    %3 = memref.load %arg1[%2] : memref<32xi32, #tpu.memory_space<smem>>
    %c0_i32 = arith.constant 0 : i32
    %c0_i32_0 = arith.constant 0 : i32
    %c0_i32_1 = arith.constant 0 : i32
    return %3, %c0_i32, %c0_i32_0 : i32, i32, i32
  }
  func.func @transform_23(%arg0: i32, %arg1: memref<32xi32, #tpu.memory_space<smem>>, %arg2: memref<1xi32, #tpu.memory_space<smem>>) -> (i32, i32, i32) {
    %c32_i32 = arith.constant 32 : i32
    %0 = arith.muli %arg0, %c32_i32 : i32
    %c23_i32 = arith.constant 23 : i32
    %1 = arith.addi %0, %c23_i32 : i32
    %2 = arith.index_cast %1 : i32 to index
    %3 = memref.load %arg1[%2] : memref<32xi32, #tpu.memory_space<smem>>
    %c0_i32 = arith.constant 0 : i32
    %c0_i32_0 = arith.constant 0 : i32
    %c0_i32_1 = arith.constant 0 : i32
    return %3, %c0_i32, %c0_i32_0 : i32, i32, i32
  }
  func.func @transform_24(%arg0: i32, %arg1: memref<32xi32, #tpu.memory_space<smem>>, %arg2: memref<1xi32, #tpu.memory_space<smem>>) -> (i32, i32, i32) {
    %c32_i32 = arith.constant 32 : i32
    %0 = arith.muli %arg0, %c32_i32 : i32
    %c24_i32 = arith.constant 24 : i32
    %1 = arith.addi %0, %c24_i32 : i32
    %2 = arith.index_cast %1 : i32 to index
    %3 = memref.load %arg1[%2] : memref<32xi32, #tpu.memory_space<smem>>
    %c0_i32 = arith.constant 0 : i32
    %c0_i32_0 = arith.constant 0 : i32
    %c0_i32_1 = arith.constant 0 : i32
    return %3, %c0_i32, %c0_i32_0 : i32, i32, i32
  }
  func.func @transform_25(%arg0: i32, %arg1: memref<32xi32, #tpu.memory_space<smem>>, %arg2: memref<1xi32, #tpu.memory_space<smem>>) -> (i32, i32, i32) {
    %c32_i32 = arith.constant 32 : i32
    %0 = arith.muli %arg0, %c32_i32 : i32
    %c25_i32 = arith.constant 25 : i32
    %1 = arith.addi %0, %c25_i32 : i32
    %2 = arith.index_cast %1 : i32 to index
    %3 = memref.load %arg1[%2] : memref<32xi32, #tpu.memory_space<smem>>
    %c0_i32 = arith.constant 0 : i32
    %c0_i32_0 = arith.constant 0 : i32
    %c0_i32_1 = arith.constant 0 : i32
    return %3, %c0_i32, %c0_i32_0 : i32, i32, i32
  }
  func.func @transform_26(%arg0: i32, %arg1: memref<32xi32, #tpu.memory_space<smem>>, %arg2: memref<1xi32, #tpu.memory_space<smem>>) -> (i32, i32, i32) {
    %c32_i32 = arith.constant 32 : i32
    %0 = arith.muli %arg0, %c32_i32 : i32
    %c26_i32 = arith.constant 26 : i32
    %1 = arith.addi %0, %c26_i32 : i32
    %2 = arith.index_cast %1 : i32 to index
    %3 = memref.load %arg1[%2] : memref<32xi32, #tpu.memory_space<smem>>
    %c0_i32 = arith.constant 0 : i32
    %c0_i32_0 = arith.constant 0 : i32
    %c0_i32_1 = arith.constant 0 : i32
    return %3, %c0_i32, %c0_i32_0 : i32, i32, i32
  }
  func.func @transform_27(%arg0: i32, %arg1: memref<32xi32, #tpu.memory_space<smem>>, %arg2: memref<1xi32, #tpu.memory_space<smem>>) -> (i32, i32, i32) {
    %c32_i32 = arith.constant 32 : i32
    %0 = arith.muli %arg0, %c32_i32 : i32
    %c27_i32 = arith.constant 27 : i32
    %1 = arith.addi %0, %c27_i32 : i32
    %2 = arith.index_cast %1 : i32 to index
    %3 = memref.load %arg1[%2] : memref<32xi32, #tpu.memory_space<smem>>
    %c0_i32 = arith.constant 0 : i32
    %c0_i32_0 = arith.constant 0 : i32
    %c0_i32_1 = arith.constant 0 : i32
    return %3, %c0_i32, %c0_i32_0 : i32, i32, i32
  }
  func.func @transform_28(%arg0: i32, %arg1: memref<32xi32, #tpu.memory_space<smem>>, %arg2: memref<1xi32, #tpu.memory_space<smem>>) -> (i32, i32, i32) {
    %c32_i32 = arith.constant 32 : i32
    %0 = arith.muli %arg0, %c32_i32 : i32
    %c28_i32 = arith.constant 28 : i32
    %1 = arith.addi %0, %c28_i32 : i32
    %2 = arith.index_cast %1 : i32 to index
    %3 = memref.load %arg1[%2] : memref<32xi32, #tpu.memory_space<smem>>
    %c0_i32 = arith.constant 0 : i32
    %c0_i32_0 = arith.constant 0 : i32
    %c0_i32_1 = arith.constant 0 : i32
    return %3, %c0_i32, %c0_i32_0 : i32, i32, i32
  }
  func.func @transform_29(%arg0: i32, %arg1: memref<32xi32, #tpu.memory_space<smem>>, %arg2: memref<1xi32, #tpu.memory_space<smem>>) -> (i32, i32, i32) {
    %c32_i32 = arith.constant 32 : i32
    %0 = arith.muli %arg0, %c32_i32 : i32
    %c29_i32 = arith.constant 29 : i32
    %1 = arith.addi %0, %c29_i32 : i32
    %2 = arith.index_cast %1 : i32 to index
    %3 = memref.load %arg1[%2] : memref<32xi32, #tpu.memory_space<smem>>
    %c0_i32 = arith.constant 0 : i32
    %c0_i32_0 = arith.constant 0 : i32
    %c0_i32_1 = arith.constant 0 : i32
    return %3, %c0_i32, %c0_i32_0 : i32, i32, i32
  }
  func.func @transform_30(%arg0: i32, %arg1: memref<32xi32, #tpu.memory_space<smem>>, %arg2: memref<1xi32, #tpu.memory_space<smem>>) -> (i32, i32, i32) {
    %c32_i32 = arith.constant 32 : i32
    %0 = arith.muli %arg0, %c32_i32 : i32
    %c30_i32 = arith.constant 30 : i32
    %1 = arith.addi %0, %c30_i32 : i32
    %2 = arith.index_cast %1 : i32 to index
    %3 = memref.load %arg1[%2] : memref<32xi32, #tpu.memory_space<smem>>
    %c0_i32 = arith.constant 0 : i32
    %c0_i32_0 = arith.constant 0 : i32
    %c0_i32_1 = arith.constant 0 : i32
    return %3, %c0_i32, %c0_i32_0 : i32, i32, i32
  }
  func.func @transform_31(%arg0: i32, %arg1: memref<32xi32, #tpu.memory_space<smem>>, %arg2: memref<1xi32, #tpu.memory_space<smem>>) -> (i32, i32, i32) {
    %c32_i32 = arith.constant 32 : i32
    %0 = arith.muli %arg0, %c32_i32 : i32
    %c31_i32 = arith.constant 31 : i32
    %1 = arith.addi %0, %c31_i32 : i32
    %2 = arith.index_cast %1 : i32 to index
    %3 = memref.load %arg1[%2] : memref<32xi32, #tpu.memory_space<smem>>
    %c0_i32 = arith.constant 0 : i32
    %c0_i32_0 = arith.constant 0 : i32
    %c0_i32_1 = arith.constant 0 : i32
    return %3, %c0_i32, %c0_i32_0 : i32, i32, i32
  }
  func.func @transform_32(%arg0: i32, %arg1: memref<32xi32, #tpu.memory_space<smem>>, %arg2: memref<1xi32, #tpu.memory_space<smem>>) -> (i32, i32) {
    %c0_i32 = arith.constant 0 : i32
    %c0_i32_0 = arith.constant 0 : i32
    return %arg0, %c0_i32 : i32, i32
  }
}

</mosaic_0001>

<llo_original>
// kernel: tpu_custom_call.1
$region0: #{tpu_custom_call.1}
  #allocation0 [shape = 'u32[]', space=smem, size = 0x4, offset = 0x4, fixed_abs, tag = 'smem constant byte address 0x4 - core index']
  #allocation1 [shape = 'u32[72,128]{1,0:T(1,128)}', space=vmem, size = 0x9000, scoped, tag = 'internal scratch']
  #allocation2 [shape = 's32[1]{0}', space=sflag, size = 0x4, scoped, tag = 'scoped memory for tpu_custom_call.1']
  #allocation3 [shape = 'u8[512]{0}', space=smem, size = 0x200, scoped, tag = 'prefetched SMEM operand 0']
  #allocation4 [shape = 's32[1]{0:T(128)S(6)}', space=smem, size = 0x200, scoped, tag = 'prefetched SMEM operand 1']
  %s0 = inlined_call_operand.smem [shape: u32[35], index: -1, kind: input, shape index: {}]
  %s1 = sld [smem:[%s0]]
  %s2 = scalar_lea.smem %s0, 1
  %s3 = sld [smem:[%s2]]
  %s4 = scalar_lea.smem %s0, 2
  %s5 = sld [smem:[%s4]]
  %s6 = scalar_lea.smem %s0, 3
  %s7 = sld [smem:[%s6]]
  %s8 = scalar_lea.smem %s0, 4
  %s9 = sld [smem:[%s8]]
  %s10 = scalar_lea.smem %s0, 5
  %s11 = sld [smem:[%s10]]
  %s12 = scalar_lea.smem %s0, 6
  %s13 = sld [smem:[%s12]]
  %s14 = scalar_lea.smem %s0, 7
  %s15 = sld [smem:[%s14]]
  %s16 = scalar_lea.smem %s0, 8
  %s17 = sld [smem:[%s16]]
  %s18 = scalar_lea.smem %s0, 9
  %s19 = sld [smem:[%s18]]
  %s20 = scalar_lea.smem %s0, 10
  %s21 = sld [smem:[%s20]]
  %s22 = scalar_lea.smem %s0, 11
  %s23 = sld [smem:[%s22]]
  %s24 = scalar_lea.smem %s0, 12
  %s25 = sld [smem:[%s24]]
  %s26 = scalar_lea.smem %s0, 13
  %s27 = sld [smem:[%s26]]
  %s28 = scalar_lea.smem %s0, 14
  %s29 = sld [smem:[%s28]]
  %s30 = scalar_lea.smem %s0, 15
  %s31 = sld [smem:[%s30]]
  %s32 = scalar_lea.smem %s0, 16
  %s33 = sld [smem:[%s32]]
  %s34 = scalar_lea.smem %s0, 17
  %s35 = sld [smem:[%s34]]
  %s36 = scalar_lea.smem %s0, 18
  %s37 = sld [smem:[%s36]]
  %s38 = scalar_lea.smem %s0, 19
  %s39 = sld [smem:[%s38]]
  %s40 = scalar_lea.smem %s0, 20
  %s41 = sld [smem:[%s40]]
  %s42 = scalar_lea.smem %s0, 21
  %s43 = sld [smem:[%s42]]
  %s44 = scalar_lea.smem %s0, 22
  %s45 = sld [smem:[%s44]]
  %s46 = scalar_lea.smem %s0, 23
  %s47 = sld [smem:[%s46]]
  %s48 = scalar_lea.smem %s0, 24
  %s49 = sld [smem:[%s48]]
  %s50 = scalar_lea.smem %s0, 25
  %s51 = sld [smem:[%s50]]
  %s52 = scalar_lea.smem %s0, 26
  %s53 = sld [smem:[%s52]]
  %s54 = scalar_lea.smem %s0, 27
  %s55 = sld [smem:[%s54]]
  %s56 = scalar_lea.smem %s0, 28
  %s57 = sld [smem:[%s56]]
  %s58 = scalar_lea.smem %s0, 29
  %s59 = sld [smem:[%s58]]
  %s60 = scalar_lea.smem %s0, 30
  %s61 = sld [smem:[%s60]]
  %s62 = scalar_lea.smem %s0, 31
  %s63 = sld [smem:[%s62]]
  %s64 = scalar_lea.smem %s0, 32
  %s65 = sld [smem:[%s64]]
  %s66 = scalar_lea.smem %s0, 33
  %s67 = sld [smem:[%s66]]
  %s68 = scalar_lea.smem %s0, 34
  %s69 = sld [smem:[%s68]]
  %s70 = sld [smem:[#allocation0]]
  $region138: #{tpu_custom_call.1} parent=0
    _
  %s72 = ssub.s32 1, %s70
  %s73 = scalar_select 0, %s72, %s70
  %s75 = sshll.u32 %s1, 4
  %s76 = int_to_ptr.vmem [resolvable:$true] %s75
  %78 = dma.vmem_to_smem %s76, 16, [#allocation3], [#allocation2]
  %79 = sst [smem:[#allocation4]] %s3
  %81 = dma.done [#allocation2], 16
  %82 = sfence
  $region1: #{tpu_custom_call.1} parent=0
    #allocation5 [shape = 'u8[4096]{0}', space=vmem, size = 0x1000, scoped, tag = 'output window, operand 0, single buffered']
    #allocation6 [shape = 's32[1]{0}', space=sflag, size = 0x4, scoped, tag = 'scoped memory for tpu_custom_call.1']
    %83 = vsyncpa [#allocation6], 0
    // Predicated region
    $region2: #{tpu_custom_call.1} parent=1 // pred_check
      _
    $region3: #{tpu_custom_call.1} parent=1 // pred_check_branch
      %85 = sbr.rel (0) target = $region5
    $region4: #{tpu_custom_call.1} parent=1 // pred_region
      %s86 = smul.u32 0, 32
      %s87 = sld [smem:[#allocation3 + %s86]]
      %p88 = scmp.lt.s32.totalorder %s87, 63
      %s89 = scalar_select %p88, %s87, 63
      %s90 = scalar_lea.vmem %s5, %s89
      %s91 = smul.u32 0, 32
      %s92 = sld [smem:[#allocation3 + %s91]]
    $region5: #{tpu_custom_call.1} parent=1 // pred_fallthru
      _
    // Predicated region
    $region6: #{tpu_custom_call.1} parent=1 // pred_check
      _
    $region7: #{tpu_custom_call.1} parent=1 // pred_check_branch
      %94 = sbr.rel (0) target = $region9
    $region8: #{tpu_custom_call.1} parent=1 // pred_region
      %s95 = smul.u32 0, 32
      %s96 = sadd.s32 %s95, 1
      %s97 = sld [smem:[#allocation3 + %s96]]
      %p98 = scmp.lt.s32.totalorder %s97, 63
      %s99 = scalar_select %p98, %s97, 63
      %s100 = scalar_lea.vmem %s7, %s99
      %s101 = smul.u32 0, 32
      %s102 = sadd.s32 %s101, 1
      %s103 = sld [smem:[#allocation3 + %s102]]
    $region9: #{tpu_custom_call.1} parent=1 // pred_fallthru
      _
    // Predicated region
    $region10: #{tpu_custom_call.1} parent=1 // pred_check
      _
    $region11: #{tpu_custom_call.1} parent=1 // pred_check_branch
      %105 = sbr.rel (0) target = $region13
    $region12: #{tpu_custom_call.1} parent=1 // pred_region
      %s106 = smul.u32 0, 32
      %s107 = sadd.s32 %s106, 2
      %s108 = sld [smem:[#allocation3 + %s107]]
      %p109 = scmp.lt.s32.totalorder %s108, 63
      %s110 = scalar_select %p109, %s108, 63
      %s111 = scalar_lea.vmem %s9, %s110
      %s112 = smul.u32 0, 32
      %s113 = sadd.s32 %s112, 2
      %s114 = sld [smem:[#allocation3 + %s113]]
    $region13: #{tpu_custom_call.1} parent=1 // pred_fallthru
      _
    // Predicated region
    $region14: #{tpu_custom_call.1} parent=1 // pred_check
      _
    $region15: #{tpu_custom_call.1} parent=1 // pred_check_branch
      %116 = sbr.rel (0) target = $region17
    $region16: #{tpu_custom_call.1} parent=1 // pred_region
      %s117 = smul.u32 0, 32
      %s118 = sadd.s32 %s117, 3
      %s119 = sld [smem:[#allocation3 + %s118]]
      %p120 = scmp.lt.s32.totalorder %s119, 63
      %s121 = scalar_select %p120, %s119, 63
      %s122 = scalar_lea.vmem %s11, %s121
      %s123 = smul.u32 0, 32
      %s124 = sadd.s32 %s123, 3
      %s125 = sld [smem:[#allocation3 + %s124]]
    $region17: #{tpu_custom_call.1} parent=1 // pred_fallthru
      _
    // Predicated region
    $region18: #{tpu_custom_call.1} parent=1 // pred_check
      _
    $region19: #{tpu_custom_call.1} parent=1 // pred_check_branch
      %127 = sbr.rel (0) target = $region21
    $region20: #{tpu_custom_call.1} parent=1 // pred_region
      %s128 = smul.u32 0, 32
      %s129 = sadd.s32 %s128, 4
      %s130 = sld [smem:[#allocation3 + %s129]]
      %p131 = scmp.lt.s32.totalorder %s130, 63
      %s132 = scalar_select %p131, %s130, 63
      %s133 = scalar_lea.vmem %s13, %s132
      %s134 = smul.u32 0, 32
      %s135 = sadd.s32 %s134, 4
      %s136 = sld [smem:[#allocation3 + %s135]]
    $region21: #{tpu_custom_call.1} parent=1 // pred_fallthru
      _
    // Predicated region
    $region22: #{tpu_custom_call.1} parent=1 // pred_check
      _
    $region23: #{tpu_custom_call.1} parent=1 // pred_check_branch
      %138 = sbr.rel (0) target = $region25
    $region24: #{tpu_custom_call.1} parent=1 // pred_region
      %s139 = smul.u32 0, 32
      %s140 = sadd.s32 %s139, 5
      %s141 = sld [smem:[#allocation3 + %s140]]
      %p142 = scmp.lt.s32.totalorder %s141, 63
      %s143 = scalar_select %p142, %s141, 63
      %s144 = scalar_lea.vmem %s15, %s143
      %s145 = smul.u32 0, 32
      %s146 = sadd.s32 %s145, 5
      %s147 = sld [smem:[#allocation3 + %s146]]
    $region25: #{tpu_custom_call.1} parent=1 // pred_fallthru
      _
    // Predicated region
    $region26: #{tpu_custom_call.1} parent=1 // pred_check
      _
    $region27: #{tpu_custom_call.1} parent=1 // pred_check_branch
      %149 = sbr.rel (0) target = $region29
    $region28: #{tpu_custom_call.1} parent=1 // pred_region
      %s150 = smul.u32 0, 32
      %s151 = sadd.s32 %s150, 6
      %s152 = sld [smem:[#allocation3 + %s151]]
      %p153 = scmp.lt.s32.totalorder %s152, 63
      %s154 = scalar_select %p153, %s152, 63
      %s155 = scalar_lea.vmem %s17, %s154
      %s156 = smul.u32 0, 32
      %s157 = sadd.s32 %s156, 6
      %s158 = sld [smem:[#allocation3 + %s157]]
    $region29: #{tpu_custom_call.1} parent=1 // pred_fallthru
      _
    // Predicated region
    $region30: #{tpu_custom_call.1} parent=1 // pred_check
      _
    $region31: #{tpu_custom_call.1} parent=1 // pred_check_branch
      %160 = sbr.rel (0) target = $region33
    $region32: #{tpu_custom_call.1} parent=1 // pred_region
      %s161 = smul.u32 0, 32
      %s162 = sadd.s32 %s161, 7
      %s163 = sld [smem:[#allocation3 + %s162]]
      %p164 = scmp.lt.s32.totalorder %s163, 63
      %s165 = scalar_select %p164, %s163, 63
      %s166 = scalar_lea.vmem %s19, %s165
      %s167 = smul.u32 0, 32
      %s168 = sadd.s32 %s167, 7
      %s169 = sld [smem:[#allocation3 + %s168]]
    $region33: #{tpu_custom_call.1} parent=1 // pred_fallthru
      _
    // Predicated region
    $region34: #{tpu_custom_call.1} parent=1 // pred_check
      _
    $region35: #{tpu_custom_call.1} parent=1 // pred_check_branch
      %171 = sbr.rel (0) target = $region37
    $region36: #{tpu_custom_call.1} parent=1 // pred_region
      %s172 = smul.u32 0, 32
      %s173 = sadd.s32 %s172, 8
      %s174 = sld [smem:[#allocation3 + %s173]]
      %p175 = scmp.lt.s32.totalorder %s174, 63
      %s176 = scalar_select %p175, %s174, 63
      %s177 = scalar_lea.vmem %s21, %s176
      %s178 = smul.u32 0, 32
      %s179 = sadd.s32 %s178, 8
      %s180 = sld [smem:[#allocation3 + %s179]]
    $region37: #{tpu_custom_call.1} parent=1 // pred_fallthru
      _
    // Predicated region
    $region38: #{tpu_custom_call.1} parent=1 // pred_check
      _
    $region39: #{tpu_custom_call.1} parent=1 // pred_check_branch
      %182 = sbr.rel (0) target = $region41
    $region40: #{tpu_custom_call.1} parent=1 // pred_region
      %s183 = smul.u32 0, 32
      %s184 = sadd.s32 %s183, 9
      %s185 = sld [smem:[#allocation3 + %s184]]
      %p186 = scmp.lt.s32.totalorder %s185, 63
      %s187 = scalar_select %p186, %s185, 63
      %s188 = scalar_lea.vmem %s23, %s187
      %s189 = smul.u32 0, 32
      %s190 = sadd.s32 %s189, 9
      %s191 = sld [smem:[#allocation3 + %s190]]
    $region41: #{tpu_custom_call.1} parent=1 // pred_fallthru
      _
    // Predicated region
    $region42: #{tpu_custom_call.1} parent=1 // pred_check
      _
    $region43: #{tpu_custom_call.1} parent=1 // pred_check_branch
      %193 = sbr.rel (0) target = $region45
    $region44: #{tpu_custom_call.1} parent=1 // pred_region
      %s194 = smul.u32 0, 32
      %s195 = sadd.s32 %s194, 10
      %s196 = sld [smem:[#allocation3 + %s195]]
      %p197 = scmp.lt.s32.totalorder %s196, 63
      %s198 = scalar_select %p197, %s196, 63
      %s199 = scalar_lea.vmem %s25, %s198
      %s200 = smul.u32 0, 32
      %s201 = sadd.s32 %s200, 10
      %s202 = sld [smem:[#allocation3 + %s201]]
    $region45: #{tpu_custom_call.1} parent=1 // pred_fallthru
      _
    // Predicated region
    $region46: #{tpu_custom_call.1} parent=1 // pred_check
      _
    $region47: #{tpu_custom_call.1} parent=1 // pred_check_branch
      %204 = sbr.rel (0) target = $region49
    $region48: #{tpu_custom_call.1} parent=1 // pred_region
      %s205 = smul.u32 0, 32
      %s206 = sadd.s32 %s205, 11
      %s207 = sld [smem:[#allocation3 + %s206]]
      %p208 = scmp.lt.s32.totalorder %s207, 63
      %s209 = scalar_select %p208, %s207, 63
      %s210 = scalar_lea.vmem %s27, %s209
      %s211 = smul.u32 0, 32
      %s212 = sadd.s32 %s211, 11
      %s213 = sld [smem:[#allocation3 + %s212]]
    $region49: #{tpu_custom_call.1} parent=1 // pred_fallthru
      _
    // Predicated region
    $region50: #{tpu_custom_call.1} parent=1 // pred_check
      _
    $region51: #{tpu_custom_call.1} parent=1 // pred_check_branch
      %215 = sbr.rel (0) target = $region53
    $region52: #{tpu_custom_call.1} parent=1 // pred_region
      %s216 = smul.u32 0, 32
      %s217 = sadd.s32 %s216, 12
      %s218 = sld [smem:[#allocation3 + %s217]]
      %p219 = scmp.lt.s32.totalorder %s218, 63
      %s220 = scalar_select %p219, %s218, 63
      %s221 = scalar_lea.vmem %s29, %s220
      %s222 = smul.u32 0, 32
      %s223 = sadd.s32 %s222, 12
      %s224 = sld [smem:[#allocation3 + %s223]]
    $region53: #{tpu_custom_call.1} parent=1 // pred_fallthru
      _
    // Predicated region
    $region54: #{tpu_custom_call.1} parent=1 // pred_check
      _
    $region55: #{tpu_custom_call.1} parent=1 // pred_check_branch
      %226 = sbr.rel (0) target = $region57
    $region56: #{tpu_custom_call.1} parent=1 // pred_region
      %s227 = smul.u32 0, 32
      %s228 = sadd.s32 %s227, 13
      %s229 = sld [smem:[#allocation3 + %s228]]
      %p230 = scmp.lt.s32.totalorder %s229, 63
      %s231 = scalar_select %p230, %s229, 63
      %s232 = scalar_lea.vmem %s31, %s231
      %s233 = smul.u32 0, 32
      %s234 = sadd.s32 %s233, 13
      %s235 = sld [smem:[#allocation3 + %s234]]
    $region57: #{tpu_custom_call.1} parent=1 // pred_fallthru
      _
    // Predicated region
    $region58: #{tpu_custom_call.1} parent=1 // pred_check
      _
    $region59: #{tpu_custom_call.1} parent=1 // pred_check_branch
      %237 = sbr.rel (0) target = $region61
    $region60: #{tpu_custom_call.1} parent=1 // pred_region
      %s238 = smul.u32 0, 32
      %s239 = sadd.s32 %s238, 14
      %s240 = sld [smem:[#allocation3 + %s239]]
      %p241 = scmp.lt.s32.totalorder %s240, 63
      %s242 = scalar_select %p241, %s240, 63
      %s243 = scalar_lea.vmem %s33, %s242
      %s244 = smul.u32 0, 32
      %s245 = sadd.s32 %s244, 14
      %s246 = sld [smem:[#allocation3 + %s245]]
    $region61: #{tpu_custom_call.1} parent=1 // pred_fallthru
      _
    // Predicated region
    $region62: #{tpu_custom_call.1} parent=1 // pred_check
      _
    $region63: #{tpu_custom_call.1} parent=1 // pred_check_branch
      %248 = sbr.rel (0) target = $region65
    $region64: #{tpu_custom_call.1} parent=1 // pred_region
      %s249 = smul.u32 0, 32
      %s250 = sadd.s32 %s249, 15
      %s251 = sld [smem:[#allocation3 + %s250]]
      %p252 = scmp.lt.s32.totalorder %s251, 63
      %s253 = scalar_select %p252, %s251, 63
      %s254 = scalar_lea.vmem %s35, %s253
      %s255 = smul.u32 0, 32
      %s256 = sadd.s32 %s255, 15
      %s257 = sld [smem:[#allocation3 + %s256]]
    $region65: #{tpu_custom_call.1} parent=1 // pred_fallthru
      _
    // Predicated region
    $region66: #{tpu_custom_call.1} parent=1 // pred_check
      _
    $region67: #{tpu_custom_call.1} parent=1 // pred_check_branch
      %259 = sbr.rel (0) target = $region69
    $region68: #{tpu_custom_call.1} parent=1 // pred_region
      %s260 = smul.u32 0, 32
      %s261 = sadd.s32 %s260, 16
      %s262 = sld [smem:[#allocation3 + %s261]]
      %p263 = scmp.lt.s32.totalorder %s262, 63
      %s264 = scalar_select %p263, %s262, 63
      %s265 = scalar_lea.vmem %s37, %s264
      %s266 = smul.u32 0, 32
      %s267 = sadd.s32 %s266, 16
      %s268 = sld [smem:[#allocation3 + %s267]]
    $region69: #{tpu_custom_call.1} parent=1 // pred_fallthru
      _
    // Predicated region
    $region70: #{tpu_custom_call.1} parent=1 // pred_check
      _
    $region71: #{tpu_custom_call.1} parent=1 // pred_check_branch
      %270 = sbr.rel (0) target = $region73
    $region72: #{tpu_custom_call.1} parent=1 // pred_region
      %s271 = smul.u32 0, 32
      %s272 = sadd.s32 %s271, 17
      %s273 = sld [smem:[#allocation3 + %s272]]
      %p274 = scmp.lt.s32.totalorder %s273, 63
      %s275 = scalar_select %p274, %s273, 63
      %s276 = scalar_lea.vmem %s39, %s275
      %s277 = smul.u32 0, 32
      %s278 = sadd.s32 %s277, 17
      %s279 = sld [smem:[#allocation3 + %s278]]
    $region73: #{tpu_custom_call.1} parent=1 // pred_fallthru
      _
    // Predicated region
    $region74: #{tpu_custom_call.1} parent=1 // pred_check
      _
    $region75: #{tpu_custom_call.1} parent=1 // pred_check_branch
      %281 = sbr.rel (0) target = $region77
    $region76: #{tpu_custom_call.1} parent=1 // pred_region
      %s282 = smul.u32 0, 32
      %s283 = sadd.s32 %s282, 18
      %s284 = sld [smem:[#allocation3 + %s283]]
      %p285 = scmp.lt.s32.totalorder %s284, 63
      %s286 = scalar_select %p285, %s284, 63
      %s287 = scalar_lea.vmem %s41, %s286
      %s288 = smul.u32 0, 32
      %s289 = sadd.s32 %s288, 18
      %s290 = sld [smem:[#allocation3 + %s289]]
    $region77: #{tpu_custom_call.1} parent=1 // pred_fallthru
      _
    // Predicated region
    $region78: #{tpu_custom_call.1} parent=1 // pred_check
      _
    $region79: #{tpu_custom_call.1} parent=1 // pred_check_branch
      %292 = sbr.rel (0) target = $region81
    $region80: #{tpu_custom_call.1} parent=1 // pred_region
      %s293 = smul.u32 0, 32
      %s294 = sadd.s32 %s293, 19
      %s295 = sld [smem:[#allocation3 + %s294]]
      %p296 = scmp.lt.s32.totalorder %s295, 63
      %s297 = scalar_select %p296, %s295, 63
      %s298 = scalar_lea.vmem %s43, %s297
      %s299 = smul.u32 0, 32
      %s300 = sadd.s32 %s299, 19
      %s301 = sld [smem:[#allocation3 + %s300]]
    $region81: #{tpu_custom_call.1} parent=1 // pred_fallthru
      _
    // Predicated region
    $region82: #{tpu_custom_call.1} parent=1 // pred_check
      _
    $region83: #{tpu_custom_call.1} parent=1 // pred_check_branch
      %303 = sbr.rel (0) target = $region85
    $region84: #{tpu_custom_call.1} parent=1 // pred_region
      %s304 = smul.u32 0, 32
      %s305 = sadd.s32 %s304, 20
      %s306 = sld [smem:[#allocation3 + %s305]]
      %p307 = scmp.lt.s32.totalorder %s306, 63
      %s308 = scalar_select %p307, %s306, 63
      %s309 = scalar_lea.vmem %s45, %s308
      %s310 = smul.u32 0, 32
      %s311 = sadd.s32 %s310, 20
      %s312 = sld [smem:[#allocation3 + %s311]]
    $region85: #{tpu_custom_call.1} parent=1 // pred_fallthru
      _
    // Predicated region
    $region86: #{tpu_custom_call.1} parent=1 // pred_check
      _
    $region87: #{tpu_custom_call.1} parent=1 // pred_check_branch
      %314 = sbr.rel (0) target = $region89
    $region88: #{tpu_custom_call.1} parent=1 // pred_region
      %s315 = smul.u32 0, 32
      %s316 = sadd.s32 %s315, 21
      %s317 = sld [smem:[#allocation3 + %s316]]
      %p318 = scmp.lt.s32.totalorder %s317, 63
      %s319 = scalar_select %p318, %s317, 63
      %s320 = scalar_lea.vmem %s47, %s319
      %s321 = smul.u32 0, 32
      %s322 = sadd.s32 %s321, 21
      %s323 = sld [smem:[#allocation3 + %s322]]
    $region89: #{tpu_custom_call.1} parent=1 // pred_fallthru
      _
    // Predicated region
    $region90: #{tpu_custom_call.1} parent=1 // pred_check
      _
    $region91: #{tpu_custom_call.1} parent=1 // pred_check_branch
      %325 = sbr.rel (0) target = $region93
    $region92: #{tpu_custom_call.1} parent=1 // pred_region
      %s326 = smul.u32 0, 32
      %s327 = sadd.s32 %s326, 22
      %s328 = sld [smem:[#allocation3 + %s327]]
      %p329 = scmp.lt.s32.totalorder %s328, 63
      %s330 = scalar_select %p329, %s328, 63
      %s331 = scalar_lea.vmem %s49, %s330
      %s332 = smul.u32 0, 32
      %s333 = sadd.s32 %s332, 22
      %s334 = sld [smem:[#allocation3 + %s333]]
    $region93: #{tpu_custom_call.1} parent=1 // pred_fallthru
      _
    // Predicated region
    $region94: #{tpu_custom_call.1} parent=1 // pred_check
      _
    $region95: #{tpu_custom_call.1} parent=1 // pred_check_branch
      %336 = sbr.rel (0) target = $region97
    $region96: #{tpu_custom_call.1} parent=1 // pred_region
      %s337 = smul.u32 0, 32
      %s338 = sadd.s32 %s337, 23
      %s339 = sld [smem:[#allocation3 + %s338]]
      %p340 = scmp.lt.s32.totalorder %s339, 63
      %s341 = scalar_select %p340, %s339, 63
      %s342 = scalar_lea.vmem %s51, %s341
      %s343 = smul.u32 0, 32
      %s344 = sadd.s32 %s343, 23
      %s345 = sld [smem:[#allocation3 + %s344]]
    $region97: #{tpu_custom_call.1} parent=1 // pred_fallthru
      _
    // Predicated region
    $region98: #{tpu_custom_call.1} parent=1 // pred_check
      _
    $region99: #{tpu_custom_call.1} parent=1 // pred_check_branch
      %347 = sbr.rel (0) target = $region101
    $region100: #{tpu_custom_call.1} parent=1 // pred_region
      %s348 = smul.u32 0, 32
      %s349 = sadd.s32 %s348, 24
      %s350 = sld [smem:[#allocation3 + %s349]]
      %p351 = scmp.lt.s32.totalorder %s350, 63
      %s352 = scalar_select %p351, %s350, 63
      %s353 = scalar_lea.vmem %s53, %s352
      %s354 = smul.u32 0, 32
      %s355 = sadd.s32 %s354, 24
      %s356 = sld [smem:[#allocation3 + %s355]]
    $region101: #{tpu_custom_call.1} parent=1 // pred_fallthru
      _
    // Predicated region
    $region102: #{tpu_custom_call.1} parent=1 // pred_check
      _
    $region103: #{tpu_custom_call.1} parent=1 // pred_check_branch
      %358 = sbr.rel (0) target = $region105
    $region104: #{tpu_custom_call.1} parent=1 // pred_region
      %s359 = smul.u32 0, 32
      %s360 = sadd.s32 %s359, 25
      %s361 = sld [smem:[#allocation3 + %s360]]
      %p362 = scmp.lt.s32.totalorder %s361, 63
      %s363 = scalar_select %p362, %s361, 63
      %s364 = scalar_lea.vmem %s55, %s363
      %s365 = smul.u32 0, 32
      %s366 = sadd.s32 %s365, 25
      %s367 = sld [smem:[#allocation3 + %s366]]
    $region105: #{tpu_custom_call.1} parent=1 // pred_fallthru
      _
    // Predicated region
    $region106: #{tpu_custom_call.1} parent=1 // pred_check
      _
    $region107: #{tpu_custom_call.1} parent=1 // pred_check_branch
      %369 = sbr.rel (0) target = $region109
    $region108: #{tpu_custom_call.1} parent=1 // pred_region
      %s370 = smul.u32 0, 32
      %s371 = sadd.s32 %s370, 26
      %s372 = sld [smem:[#allocation3 + %s371]]
      %p373 = scmp.lt.s32.totalorder %s372, 63
      %s374 = scalar_select %p373, %s372, 63
      %s375 = scalar_lea.vmem %s57, %s374
      %s376 = smul.u32 0, 32
      %s377 = sadd.s32 %s376, 26
      %s378 = sld [smem:[#allocation3 + %s377]]
    $region109: #{tpu_custom_call.1} parent=1 // pred_fallthru
      _
    // Predicated region
    $region110: #{tpu_custom_call.1} parent=1 // pred_check
      _
    $region111: #{tpu_custom_call.1} parent=1 // pred_check_branch
      %380 = sbr.rel (0) target = $region113
    $region112: #{tpu_custom_call.1} parent=1 // pred_region
      %s381 = smul.u32 0, 32
      %s382 = sadd.s32 %s381, 27
      %s383 = sld [smem:[#allocation3 + %s382]]
      %p384 = scmp.lt.s32.totalorder %s383, 63
      %s385 = scalar_select %p384, %s383, 63
      %s386 = scalar_lea.vmem %s59, %s385
      %s387 = smul.u32 0, 32
      %s388 = sadd.s32 %s387, 27
      %s389 = sld [smem:[#allocation3 + %s388]]
    $region113: #{tpu_custom_call.1} parent=1 // pred_fallthru
      _
    // Predicated region
    $region114: #{tpu_custom_call.1} parent=1 // pred_check
      _
    $region115: #{tpu_custom_call.1} parent=1 // pred_check_branch
      %391 = sbr.rel (0) target = $region117
    $region116: #{tpu_custom_call.1} parent=1 // pred_region
      %s392 = smul.u32 0, 32
      %s393 = sadd.s32 %s392, 28
      %s394 = sld [smem:[#allocation3 + %s393]]
      %p395 = scmp.lt.s32.totalorder %s394, 63
      %s396 = scalar_select %p395, %s394, 63
      %s397 = scalar_lea.vmem %s61, %s396
      %s398 = smul.u32 0, 32
      %s399 = sadd.s32 %s398, 28
      %s400 = sld [smem:[#allocation3 + %s399]]
    $region117: #{tpu_custom_call.1} parent=1 // pred_fallthru
      _
    // Predicated region
    $region118: #{tpu_custom_call.1} parent=1 // pred_check
      _
    $region119: #{tpu_custom_call.1} parent=1 // pred_check_branch
      %402 = sbr.rel (0) target = $region121
    $region120: #{tpu_custom_call.1} parent=1 // pred_region
      %s403 = smul.u32 0, 32
      %s404 = sadd.s32 %s403, 29
      %s405 = sld [smem:[#allocation3 + %s404]]
      %p406 = scmp.lt.s32.totalorder %s405, 63
      %s407 = scalar_select %p406, %s405, 63
      %s408 = scalar_lea.vmem %s63, %s407
      %s409 = smul.u32 0, 32
      %s410 = sadd.s32 %s409, 29
      %s411 = sld [smem:[#allocation3 + %s410]]
    $region121: #{tpu_custom_call.1} parent=1 // pred_fallthru
      _
    // Predicated region
    $region122: #{tpu_custom_call.1} parent=1 // pred_check
      _
    $region123: #{tpu_custom_call.1} parent=1 // pred_check_branch
      %413 = sbr.rel (0) target = $region125
    $region124: #{tpu_custom_call.1} parent=1 // pred_region
      %s414 = smul.u32 0, 32
      %s415 = sadd.s32 %s414, 30
      %s416 = sld [smem:[#allocation3 + %s415]]
      %p417 = scmp.lt.s32.totalorder %s416, 63
      %s418 = scalar_select %p417, %s416, 63
      %s419 = scalar_lea.vmem %s65, %s418
      %s420 = smul.u32 0, 32
      %s421 = sadd.s32 %s420, 30
      %s422 = sld [smem:[#allocation3 + %s421]]
    $region125: #{tpu_custom_call.1} parent=1 // pred_fallthru
      _
    // Predicated region
    $region126: #{tpu_custom_call.1} parent=1 // pred_check
      _
    $region127: #{tpu_custom_call.1} parent=1 // pred_check_branch
      %424 = sbr.rel (0) target = $region129
    $region128: #{tpu_custom_call.1} parent=1 // pred_region
      %s425 = smul.u32 0, 32
      %s426 = sadd.s32 %s425, 31
      %s427 = sld [smem:[#allocation3 + %s426]]
      %p428 = scmp.lt.s32.totalorder %s427, 63
      %s429 = scalar_select %p428, %s427, 63
      %s430 = scalar_lea.vmem %s67, %s429
      %s431 = smul.u32 0, 32
      %s432 = sadd.s32 %s431, 31
      %s433 = sld [smem:[#allocation3 + %s432]]
    $region129: #{tpu_custom_call.1} parent=1 // pred_fallthru
      _
    %s434 = smul.u32 0, 32
    %s435 = sld [smem:[#allocation3 + %s434]]
    %p436 = scmp.lt.s32.totalorder %s435, 63
    %s437 = scalar_select %p436, %s435, 63
    %s438 = scalar_lea.vmem %s5, %s437
    %s439 = smul.u32 0, 32
    %s440 = sadd.s32 %s439, 1
    %s441 = sld [smem:[#allocation3 + %s440]]
    %p442 = scmp.lt.s32.totalorder %s441, 63
    %s443 = scalar_select %p442, %s441, 63
    %s444 = scalar_lea.vmem %s7, %s443
    %s445 = smul.u32 0, 32
    %s446 = sadd.s32 %s445, 2
    %s447 = sld [smem:[#allocation3 + %s446]]
    %p448 = scmp.lt.s32.totalorder %s447, 63
    %s449 = scalar_select %p448, %s447, 63
    %s450 = scalar_lea.vmem %s9, %s449
    %s451 = smul.u32 0, 32
    %s452 = sadd.s32 %s451, 3
    %s453 = sld [smem:[#allocation3 + %s452]]
    %p454 = scmp.lt.s32.totalorder %s453, 63
    %s455 = scalar_select %p454, %s453, 63
    %s456 = scalar_lea.vmem %s11, %s455
    %s457 = smul.u32 0, 32
    %s458 = sadd.s32 %s457, 4
    %s459 = sld [smem:[#allocation3 + %s458]]
    %p460 = scmp.lt.s32.totalorder %s459, 63
    %s461 = scalar_select %p460, %s459, 63
    %s462 = scalar_lea.vmem %s13, %s461
    %s463 = smul.u32 0, 32
    %s464 = sadd.s32 %s463, 5
    %s465 = sld [smem:[#allocation3 + %s464]]
    %p466 = scmp.lt.s32.totalorder %s465, 63
    %s467 = scalar_select %p466, %s465, 63
    %s468 = scalar_lea.vmem %s15, %s467
    %s469 = smul.u32 0, 32
    %s470 = sadd.s32 %s469, 6
    %s471 = sld [smem:[#allocation3 + %s470]]
    %p472 = scmp.lt.s32.totalorder %s471, 63
    %s473 = scalar_select %p472, %s471, 63
    %s474 = scalar_lea.vmem %s17, %s473
    %s475 = smul.u32 0, 32
    %s476 = sadd.s32 %s475, 7
    %s477 = sld [smem:[#allocation3 + %s476]]
    %p478 = scmp.lt.s32.totalorder %s477, 63
    %s479 = scalar_select %p478, %s477, 63
    %s480 = scalar_lea.vmem %s19, %s479
    %s481 = smul.u32 0, 32
    %s482 = sadd.s32 %s481, 8
    %s483 = sld [smem:[#allocation3 + %s482]]
    %p484 = scmp.lt.s32.totalorder %s483, 63
    %s485 = scalar_select %p484, %s483, 63
    %s486 = scalar_lea.vmem %s21, %s485
    %s487 = smul.u32 0, 32
    %s488 = sadd.s32 %s487, 9
    %s489 = sld [smem:[#allocation3 + %s488]]
    %p490 = scmp.lt.s32.totalorder %s489, 63
    %s491 = scalar_select %p490, %s489, 63
    %s492 = scalar_lea.vmem %s23, %s491
    %s493 = smul.u32 0, 32
    %s494 = sadd.s32 %s493, 10
    %s495 = sld [smem:[#allocation3 + %s494]]
    %p496 = scmp.lt.s32.totalorder %s495, 63
    %s497 = scalar_select %p496, %s495, 63
    %s498 = scalar_lea.vmem %s25, %s497
    %s499 = smul.u32 0, 32
    %s500 = sadd.s32 %s499, 11
    %s501 = sld [smem:[#allocation3 + %s500]]
    %p502 = scmp.lt.s32.totalorder %s501, 63
    %s503 = scalar_select %p502, %s501, 63
    %s504 = scalar_lea.vmem %s27, %s503
    %s505 = smul.u32 0, 32
    %s506 = sadd.s32 %s505, 12
    %s507 = sld [smem:[#allocation3 + %s506]]
    %p508 = scmp.lt.s32.totalorder %s507, 63
    %s509 = scalar_select %p508, %s507, 63
    %s510 = scalar_lea.vmem %s29, %s509
    %s511 = smul.u32 0, 32
    %s512 = sadd.s32 %s511, 13
    %s513 = sld [smem:[#allocation3 + %s512]]
    %p514 = scmp.lt.s32.totalorder %s513, 63
    %s515 = scalar_select %p514, %s513, 63
    %s516 = scalar_lea.vmem %s31, %s515
    %s517 = smul.u32 0, 32
    %s518 = sadd.s32 %s517, 14
    %s519 = sld [smem:[#allocation3 + %s518]]
    %p520 = scmp.lt.s32.totalorder %s519, 63
    %s521 = scalar_select %p520, %s519, 63
    %s522 = scalar_lea.vmem %s33, %s521
    %s523 = smul.u32 0, 32
    %s524 = sadd.s32 %s523, 15
    %s525 = sld [smem:[#allocation3 + %s524]]
    %p526 = scmp.lt.s32.totalorder %s525, 63
    %s527 = scalar_select %p526, %s525, 63
    %s528 = scalar_lea.vmem %s35, %s527
    %s529 = smul.u32 0, 32
    %s530 = sadd.s32 %s529, 16
    %s531 = sld [smem:[#allocation3 + %s530]]
    %p532 = scmp.lt.s32.totalorder %s531, 63
    %s533 = scalar_select %p532, %s531, 63
    %s534 = scalar_lea.vmem %s37, %s533
    %s535 = smul.u32 0, 32
    %s536 = sadd.s32 %s535, 17
    %s537 = sld [smem:[#allocation3 + %s536]]
    %p538 = scmp.lt.s32.totalorder %s537, 63
    %s539 = scalar_select %p538, %s537, 63
    %s540 = scalar_lea.vmem %s39, %s539
    %s541 = smul.u32 0, 32
    %s542 = sadd.s32 %s541, 18
    %s543 = sld [smem:[#allocation3 + %s542]]
    %p544 = scmp.lt.s32.totalorder %s543, 63
    %s545 = scalar_select %p544, %s543, 63
    %s546 = scalar_lea.vmem %s41, %s545
    %s547 = smul.u32 0, 32
    %s548 = sadd.s32 %s547, 19
    %s549 = sld [smem:[#allocation3 + %s548]]
    %p550 = scmp.lt.s32.totalorder %s549, 63
    %s551 = scalar_select %p550, %s549, 63
    %s552 = scalar_lea.vmem %s43, %s551
    %s553 = smul.u32 0, 32
    %s554 = sadd.s32 %s553, 20
    %s555 = sld [smem:[#allocation3 + %s554]]
    %p556 = scmp.lt.s32.totalorder %s555, 63
    %s557 = scalar_select %p556, %s555, 63
    %s558 = scalar_lea.vmem %s45, %s557
    %s559 = smul.u32 0, 32
    %s560 = sadd.s32 %s559, 21
    %s561 = sld [smem:[#allocation3 + %s560]]
    %p562 = scmp.lt.s32.totalorder %s561, 63
    %s563 = scalar_select %p562, %s561, 63
    %s564 = scalar_lea.vmem %s47, %s563
    %s565 = smul.u32 0, 32
    %s566 = sadd.s32 %s565, 22
    %s567 = sld [smem:[#allocation3 + %s566]]
    %p568 = scmp.lt.s32.totalorder %s567, 63
    %s569 = scalar_select %p568, %s567, 63
    %s570 = scalar_lea.vmem %s49, %s569
    %s571 = smul.u32 0, 32
    %s572 = sadd.s32 %s571, 23
    %s573 = sld [smem:[#allocation3 + %s572]]
    %p574 = scmp.lt.s32.totalorder %s573, 63
    %s575 = scalar_select %p574, %s573, 63
    %s576 = scalar_lea.vmem %s51, %s575
    %s577 = smul.u32 0, 32
    %s578 = sadd.s32 %s577, 24
    %s579 = sld [smem:[#allocation3 + %s578]]
    %p580 = scmp.lt.s32.totalorder %s579, 63
    %s581 = scalar_select %p580, %s579, 63
    %s582 = scalar_lea.vmem %s53, %s581
    %s583 = smul.u32 0, 32
    %s584 = sadd.s32 %s583, 25
    %s585 = sld [smem:[#allocation3 + %s584]]
    %p586 = scmp.lt.s32.totalorder %s585, 63
    %s587 = scalar_select %p586, %s585, 63
    %s588 = scalar_lea.vmem %s55, %s587
    %s589 = smul.u32 0, 32
    %s590 = sadd.s32 %s589, 26
    %s591 = sld [smem:[#allocation3 + %s590]]
    %p592 = scmp.lt.s32.totalorder %s591, 63
    %s593 = scalar_select %p592, %s591, 63
    %s594 = scalar_lea.vmem %s57, %s593
    %s595 = smul.u32 0, 32
    %s596 = sadd.s32 %s595, 27
    %s597 = sld [smem:[#allocation3 + %s596]]
    %p598 = scmp.lt.s32.totalorder %s597, 63
    %s599 = scalar_select %p598, %s597, 63
    %s600 = scalar_lea.vmem %s59, %s599
    %s601 = smul.u32 0, 32
    %s602 = sadd.s32 %s601, 28
    %s603 = sld [smem:[#allocation3 + %s602]]
    %p604 = scmp.lt.s32.totalorder %s603, 63
    %s605 = scalar_select %p604, %s603, 63
    %s606 = scalar_lea.vmem %s61, %s605
    %s607 = smul.u32 0, 32
    %s608 = sadd.s32 %s607, 29
    %s609 = sld [smem:[#allocation3 + %s608]]
    %p610 = scmp.lt.s32.totalorder %s609, 63
    %s611 = scalar_select %p610, %s609, 63
    %s612 = scalar_lea.vmem %s63, %s611
    %s613 = smul.u32 0, 32
    %s614 = sadd.s32 %s613, 30
    %s615 = sld [smem:[#allocation3 + %s614]]
    %p616 = scmp.lt.s32.totalorder %s615, 63
    %s617 = scalar_select %p616, %s615, 63
    %s618 = scalar_lea.vmem %s65, %s617
    %s619 = smul.u32 0, 32
    %s620 = sadd.s32 %s619, 31
    %s621 = sld [smem:[#allocation3 + %s620]]
    %p622 = scmp.lt.s32.totalorder %s621, 63
    %s623 = scalar_select %p622, %s621, 63
    %s624 = scalar_lea.vmem %s67, %s623
    %s625 = smul.u32 0, 32
    %s626 = sld [smem:[#allocation3 + %s625]]
    %p627 = scmp.lt.s32.totalorder %s626, 63
    %s628 = scalar_select %p627, %s626, 63
    %s629 = scalar_lea.vmem %s5, %s628
    %s630 = smul.u32 0, 32
    %s631 = sld [smem:[#allocation3 + %s630]]
    %s632 = smul.u32 0, 32
    %s633 = sadd.s32 %s632, 1
    %s634 = sld [smem:[#allocation3 + %s633]]
    %p635 = scmp.lt.s32.totalorder %s634, 63
    %s636 = scalar_select %p635, %s634, 63
    %s637 = scalar_lea.vmem %s7, %s636
    %s638 = smul.u32 0, 32
    %s639 = sadd.s32 %s638, 1
    %s640 = sld [smem:[#allocation3 + %s639]]
    %s641 = smul.u32 0, 32
    %s642 = sadd.s32 %s641, 2
    %s643 = sld [smem:[#allocation3 + %s642]]
    %p644 = scmp.lt.s32.totalorder %s643, 63
    %s645 = scalar_select %p644, %s643, 63
    %s646 = scalar_lea.vmem %s9, %s645
    %s647 = smul.u32 0, 32
    %s648 = sadd.s32 %s647, 2
    %s649 = sld [smem:[#allocation3 + %s648]]
    %s650 = smul.u32 0, 32
    %s651 = sadd.s32 %s650, 3
    %s652 = sld [smem:[#allocation3 + %s651]]
    %p653 = scmp.lt.s32.totalorder %s652, 63
    %s654 = scalar_select %p653, %s652, 63
    %s655 = scalar_lea.vmem %s11, %s654
    %s656 = smul.u32 0, 32
    %s657 = sadd.s32 %s656, 3
    %s658 = sld [smem:[#allocation3 + %s657]]
    %s659 = smul.u32 0, 32
    %s660 = sadd.s32 %s659, 4
    %s661 = sld [smem:[#allocation3 + %s660]]
    %p662 = scmp.lt.s32.totalorder %s661, 63
    %s663 = scalar_select %p662, %s661, 63
    %s664 = scalar_lea.vmem %s13, %s663
    %s665 = smul.u32 0, 32
    %s666 = sadd.s32 %s665, 4
    %s667 = sld [smem:[#allocation3 + %s666]]
    %s668 = smul.u32 0, 32
    %s669 = sadd.s32 %s668, 5
    %s670 = sld [smem:[#allocation3 + %s669]]
    %p671 = scmp.lt.s32.totalorder %s670, 63
    %s672 = scalar_select %p671, %s670, 63
    %s673 = scalar_lea.vmem %s15, %s672
    %s674 = smul.u32 0, 32
    %s675 = sadd.s32 %s674, 5
    %s676 = sld [smem:[#allocation3 + %s675]]
    %s677 = smul.u32 0, 32
    %s678 = sadd.s32 %s677, 6
    %s679 = sld [smem:[#allocation3 + %s678]]
    %p680 = scmp.lt.s32.totalorder %s679, 63
    %s681 = scalar_select %p680, %s679, 63
    %s682 = scalar_lea.vmem %s17, %s681
    %s683 = smul.u32 0, 32
    %s684 = sadd.s32 %s683, 6
    %s685 = sld [smem:[#allocation3 + %s684]]
    %s686 = smul.u32 0, 32
    %s687 = sadd.s32 %s686, 7
    %s688 = sld [smem:[#allocation3 + %s687]]
    %p689 = scmp.lt.s32.totalorder %s688, 63
    %s690 = scalar_select %p689, %s688, 63
    %s691 = scalar_lea.vmem %s19, %s690
    %s692 = smul.u32 0, 32
    %s693 = sadd.s32 %s692, 7
    %s694 = sld [smem:[#allocation3 + %s693]]
    %s695 = smul.u32 0, 32
    %s696 = sadd.s32 %s695, 8
    %s697 = sld [smem:[#allocation3 + %s696]]
    %p698 = scmp.lt.s32.totalorder %s697, 63
    %s699 = scalar_select %p698, %s697, 63
    %s700 = scalar_lea.vmem %s21, %s699
    %s701 = smul.u32 0, 32
    %s702 = sadd.s32 %s701, 8
    %s703 = sld [smem:[#allocation3 + %s702]]
    %s704 = smul.u32 0, 32
    %s705 = sadd.s32 %s704, 9
    %s706 = sld [smem:[#allocation3 + %s705]]
    %p707 = scmp.lt.s32.totalorder %s706, 63
    %s708 = scalar_select %p707, %s706, 63
    %s709 = scalar_lea.vmem %s23, %s708
    %s710 = smul.u32 0, 32
    %s711 = sadd.s32 %s710, 9
    %s712 = sld [smem:[#allocation3 + %s711]]
    %s713 = smul.u32 0, 32
    %s714 = sadd.s32 %s713, 10
    %s715 = sld [smem:[#allocation3 + %s714]]
    %p716 = scmp.lt.s32.totalorder %s715, 63
    %s717 = scalar_select %p716, %s715, 63
    %s718 = scalar_lea.vmem %s25, %s717
    %s719 = smul.u32 0, 32
    %s720 = sadd.s32 %s719, 10
    %s721 = sld [smem:[#allocation3 + %s720]]
    %s722 = smul.u32 0, 32
    %s723 = sadd.s32 %s722, 11
    %s724 = sld [smem:[#allocation3 + %s723]]
    %p725 = scmp.lt.s32.totalorder %s724, 63
    %s726 = scalar_select %p725, %s724, 63
    %s727 = scalar_lea.vmem %s27, %s726
    %s728 = smul.u32 0, 32
    %s729 = sadd.s32 %s728, 11
    %s730 = sld [smem:[#allocation3 + %s729]]
    %s731 = smul.u32 0, 32
    %s732 = sadd.s32 %s731, 12
    %s733 = sld [smem:[#allocation3 + %s732]]
    %p734 = scmp.lt.s32.totalorder %s733, 63
    %s735 = scalar_select %p734, %s733, 63
    %s736 = scalar_lea.vmem %s29, %s735
    %s737 = smul.u32 0, 32
    %s738 = sadd.s32 %s737, 12
    %s739 = sld [smem:[#allocation3 + %s738]]
    %s740 = smul.u32 0, 32
    %s741 = sadd.s32 %s740, 13
    %s742 = sld [smem:[#allocation3 + %s741]]
    %p743 = scmp.lt.s32.totalorder %s742, 63
    %s744 = scalar_select %p743, %s742, 63
    %s745 = scalar_lea.vmem %s31, %s744
    %s746 = smul.u32 0, 32
    %s747 = sadd.s32 %s746, 13
    %s748 = sld [smem:[#allocation3 + %s747]]
    %s749 = smul.u32 0, 32
    %s750 = sadd.s32 %s749, 14
    %s751 = sld [smem:[#allocation3 + %s750]]
    %p752 = scmp.lt.s32.totalorder %s751, 63
    %s753 = scalar_select %p752, %s751, 63
    %s754 = scalar_lea.vmem %s33, %s753
    %s755 = smul.u32 0, 32
    %s756 = sadd.s32 %s755, 14
    %s757 = sld [smem:[#allocation3 + %s756]]
    %s758 = smul.u32 0, 32
    %s759 = sadd.s32 %s758, 15
    %s760 = sld [smem:[#allocation3 + %s759]]
    %p761 = scmp.lt.s32.totalorder %s760, 63
    %s762 = scalar_select %p761, %s760, 63
    %s763 = scalar_lea.vmem %s35, %s762
    %s764 = smul.u32 0, 32
    %s765 = sadd.s32 %s764, 15
    %s766 = sld [smem:[#allocation3 + %s765]]
    %s767 = smul.u32 0, 32
    %s768 = sadd.s32 %s767, 16
    %s769 = sld [smem:[#allocation3 + %s768]]
    %p770 = scmp.lt.s32.totalorder %s769, 63
    %s771 = scalar_select %p770, %s769, 63
    %s772 = scalar_lea.vmem %s37, %s771
    %s773 = smul.u32 0, 32
    %s774 = sadd.s32 %s773, 16
    %s775 = sld [smem:[#allocation3 + %s774]]
    %s776 = smul.u32 0, 32
    %s777 = sadd.s32 %s776, 17
    %s778 = sld [smem:[#allocation3 + %s777]]
    %p779 = scmp.lt.s32.totalorder %s778, 63
    %s780 = scalar_select %p779, %s778, 63
    %s781 = scalar_lea.vmem %s39, %s780
    %s782 = smul.u32 0, 32
    %s783 = sadd.s32 %s782, 17
    %s784 = sld [smem:[#allocation3 + %s783]]
    %s785 = smul.u32 0, 32
    %s786 = sadd.s32 %s785, 18
    %s787 = sld [smem:[#allocation3 + %s786]]
    %p788 = scmp.lt.s32.totalorder %s787, 63
    %s789 = scalar_select %p788, %s787, 63
    %s790 = scalar_lea.vmem %s41, %s789
    %s791 = smul.u32 0, 32
    %s792 = sadd.s32 %s791, 18
    %s793 = sld [smem:[#allocation3 + %s792]]
    %s794 = smul.u32 0, 32
    %s795 = sadd.s32 %s794, 19
    %s796 = sld [smem:[#allocation3 + %s795]]
    %p797 = scmp.lt.s32.totalorder %s796, 63
    %s798 = scalar_select %p797, %s796, 63
    %s799 = scalar_lea.vmem %s43, %s798
    %s800 = smul.u32 0, 32
    %s801 = sadd.s32 %s800, 19
    %s802 = sld [smem:[#allocation3 + %s801]]
    %s803 = smul.u32 0, 32
    %s804 = sadd.s32 %s803, 20
    %s805 = sld [smem:[#allocation3 + %s804]]
    %p806 = scmp.lt.s32.totalorder %s805, 63
    %s807 = scalar_select %p806, %s805, 63
    %s808 = scalar_lea.vmem %s45, %s807
    %s809 = smul.u32 0, 32
    %s810 = sadd.s32 %s809, 20
    %s811 = sld [smem:[#allocation3 + %s810]]
    %s812 = smul.u32 0, 32
    %s813 = sadd.s32 %s812, 21
    %s814 = sld [smem:[#allocation3 + %s813]]
    %p815 = scmp.lt.s32.totalorder %s814, 63
    %s816 = scalar_select %p815, %s814, 63
    %s817 = scalar_lea.vmem %s47, %s816
    %s818 = smul.u32 0, 32
    %s819 = sadd.s32 %s818, 21
    %s820 = sld [smem:[#allocation3 + %s819]]
    %s821 = smul.u32 0, 32
    %s822 = sadd.s32 %s821, 22
    %s823 = sld [smem:[#allocation3 + %s822]]
    %p824 = scmp.lt.s32.totalorder %s823, 63
    %s825 = scalar_select %p824, %s823, 63
    %s826 = scalar_lea.vmem %s49, %s825
    %s827 = smul.u32 0, 32
    %s828 = sadd.s32 %s827, 22
    %s829 = sld [smem:[#allocation3 + %s828]]
    %s830 = smul.u32 0, 32
    %s831 = sadd.s32 %s830, 23
    %s832 = sld [smem:[#allocation3 + %s831]]
    %p833 = scmp.lt.s32.totalorder %s832, 63
    %s834 = scalar_select %p833, %s832, 63
    %s835 = scalar_lea.vmem %s51, %s834
    %s836 = smul.u32 0, 32
    %s837 = sadd.s32 %s836, 23
    %s838 = sld [smem:[#allocation3 + %s837]]
    %s839 = smul.u32 0, 32
    %s840 = sadd.s32 %s839, 24
    %s841 = sld [smem:[#allocation3 + %s840]]
    %p842 = scmp.lt.s32.totalorder %s841, 63
    %s843 = scalar_select %p842, %s841, 63
    %s844 = scalar_lea.vmem %s53, %s843
    %s845 = smul.u32 0, 32
    %s846 = sadd.s32 %s845, 24
    %s847 = sld [smem:[#allocation3 + %s846]]
    %s848 = smul.u32 0, 32
    %s849 = sadd.s32 %s848, 25
    %s850 = sld [smem:[#allocation3 + %s849]]
    %p851 = scmp.lt.s32.totalorder %s850, 63
    %s852 = scalar_select %p851, %s850, 63
    %s853 = scalar_lea.vmem %s55, %s852
    %s854 = smul.u32 0, 32
    %s855 = sadd.s32 %s854, 25
    %s856 = sld [smem:[#allocation3 + %s855]]
    %s857 = smul.u32 0, 32
    %s858 = sadd.s32 %s857, 26
    %s859 = sld [smem:[#allocation3 + %s858]]
    %p860 = scmp.lt.s32.totalorder %s859, 63
    %s861 = scalar_select %p860, %s859, 63
    %s862 = scalar_lea.vmem %s57, %s861
    %s863 = smul.u32 0, 32
    %s864 = sadd.s32 %s863, 26
    %s865 = sld [smem:[#allocation3 + %s864]]
    %s866 = smul.u32 0, 32
    %s867 = sadd.s32 %s866, 27
    %s868 = sld [smem:[#allocation3 + %s867]]
    %p869 = scmp.lt.s32.totalorder %s868, 63
    %s870 = scalar_select %p869, %s868, 63
    %s871 = scalar_lea.vmem %s59, %s870
    %s872 = smul.u32 0, 32
    %s873 = sadd.s32 %s872, 27
    %s874 = sld [smem:[#allocation3 + %s873]]
    %s875 = smul.u32 0, 32
    %s876 = sadd.s32 %s875, 28
    %s877 = sld [smem:[#allocation3 + %s876]]
    %p878 = scmp.lt.s32.totalorder %s877, 63
    %s879 = scalar_select %p878, %s877, 63
    %s880 = scalar_lea.vmem %s61, %s879
    %s881 = smul.u32 0, 32
    %s882 = sadd.s32 %s881, 28
    %s883 = sld [smem:[#allocation3 + %s882]]
    %s884 = smul.u32 0, 32
    %s885 = sadd.s32 %s884, 29
    %s886 = sld [smem:[#allocation3 + %s885]]
    %p887 = scmp.lt.s32.totalorder %s886, 63
    %s888 = scalar_select %p887, %s886, 63
    %s889 = scalar_lea.vmem %s63, %s888
    %s890 = smul.u32 0, 32
    %s891 = sadd.s32 %s890, 29
    %s892 = sld [smem:[#allocation3 + %s891]]
    %s893 = smul.u32 0, 32
    %s894 = sadd.s32 %s893, 30
    %s895 = sld [smem:[#allocation3 + %s894]]
    %p896 = scmp.lt.s32.totalorder %s895, 63
    %s897 = scalar_select %p896, %s895, 63
    %s898 = scalar_lea.vmem %s65, %s897
    %s899 = smul.u32 0, 32
    %s900 = sadd.s32 %s899, 30
    %s901 = sld [smem:[#allocation3 + %s900]]
    %s902 = smul.u32 0, 32
    %s903 = sadd.s32 %s902, 31
    %s904 = sld [smem:[#allocation3 + %s903]]
    %p905 = scmp.lt.s32.totalorder %s904, 63
    %s906 = scalar_select %p905, %s904, 63
    %s907 = scalar_lea.vmem %s67, %s906
    %s908 = smul.u32 0, 32
    %s909 = sadd.s32 %s908, 31
    %s910 = sld [smem:[#allocation3 + %s909]]
    %v911 = vld [vmem:[%s629] sm:$0x1]
    %v912 = vld [vmem:[%s637] sm:$0x1]
    %v913 = vld [vmem:[%s646] sm:$0x1]
    %v914 = vld [vmem:[%s655] sm:$0x1]
    %v916 = vperm.slane %v912, 0
    %917 = vrot.lane.b32.xlu0 %v916, 32
    %v918 = vpop.permute.xlu0 %917
    %v921 = vperm.slane %v913, 0
    %922 = vrot.lane.b32.xlu0 %v921, 64
    %v923 = vpop.permute.xlu0 %922
    %v926 = vperm.slane %v914, 0
    %927 = vrot.lane.b32.xlu0 %v926, 96
    %v928 = vpop.permute.xlu0 %927
    %vm930 = vcmask 261120
    %v931 = vsel %vm930, %v911, %v918
    %vm932 = vcmask 523264
    %v933 = vsel %vm932, %v931, %v923
    %vm934 = vcmask 785408
    %v935 = vsel %vm934, %v933, %v928
    %v936 = vld [vmem:[%s664] sm:$0x1]
    %v937 = vld [vmem:[%s673] sm:$0x1]
    %v938 = vld [vmem:[%s682] sm:$0x1]
    %v939 = vld [vmem:[%s691] sm:$0x1]
    %v941 = vperm.slane %v937, 0
    %942 = vrot.lane.b32.xlu0 %v941, 32
    %v943 = vpop.permute.xlu0 %942
    %v946 = vperm.slane %v938, 0
    %947 = vrot.lane.b32.xlu0 %v946, 64
    %v948 = vpop.permute.xlu0 %947
    %v951 = vperm.slane %v939, 0
    %952 = vrot.lane.b32.xlu0 %v951, 96
    %v953 = vpop.permute.xlu0 %952
    %v955 = vsel %vm930, %v936, %v943
    %v956 = vsel %vm932, %v955, %v948
    %v957 = vsel %vm934, %v956, %v953
    %v958 = vld [vmem:[%s700] sm:$0x1]
    %v959 = vld [vmem:[%s709] sm:$0x1]
    %v960 = vld [vmem:[%s718] sm:$0x1]
    %v961 = vld [vmem:[%s727] sm:$0x1]
    %v963 = vperm.slane %v959, 0
    %964 = vrot.lane.b32.xlu0 %v963, 32
    %v965 = vpop.permute.xlu0 %964
    %v968 = vperm.slane %v960, 0
    %969 = vrot.lane.b32.xlu0 %v968, 64
    %v970 = vpop.permute.xlu0 %969
    %v973 = vperm.slane %v961, 0
    %974 = vrot.lane.b32.xlu0 %v973, 96
    %v975 = vpop.permute.xlu0 %974
    %v977 = vsel %vm930, %v958, %v965
    %v978 = vsel %vm932, %v977, %v970
    %v979 = vsel %vm934, %v978, %v975
    %v980 = vld [vmem:[%s736] sm:$0x1]
    %v981 = vld [vmem:[%s745] sm:$0x1]
    %v982 = vld [vmem:[%s754] sm:$0x1]
    %v983 = vld [vmem:[%s763] sm:$0x1]
    %v985 = vperm.slane %v981, 0
    %986 = vrot.lane.b32.xlu0 %v985, 32
    %v987 = vpop.permute.xlu0 %986
    %v990 = vperm.slane %v982, 0
    %991 = vrot.lane.b32.xlu0 %v990, 64
    %v992 = vpop.permute.xlu0 %991
    %v995 = vperm.slane %v983, 0
    %996 = vrot.lane.b32.xlu0 %v995, 96
    %v997 = vpop.permute.xlu0 %996
    %v999 = vsel %vm930, %v980, %v987
    %v1000 = vsel %vm932, %v999, %v992
    %v1001 = vsel %vm934, %v1000, %v997
    %v1002 = vld [vmem:[%s772] sm:$0x1]
    %v1003 = vld [vmem:[%s781] sm:$0x1]
    %v1004 = vld [vmem:[%s790] sm:$0x1]
    %v1005 = vld [vmem:[%s799] sm:$0x1]
    %v1007 = vperm.slane %v1003, 0
    %1008 = vrot.lane.b32.xlu0 %v1007, 32
    %v1009 = vpop.permute.xlu0 %1008
    %v1012 = vperm.slane %v1004, 0
    %1013 = vrot.lane.b32.xlu0 %v1012, 64
    %v1014 = vpop.permute.xlu0 %1013
    %v1017 = vperm.slane %v1005, 0
    %1018 = vrot.lane.b32.xlu0 %v1017, 96
    %v1019 = vpop.permute.xlu0 %1018
    %v1021 = vsel %vm930, %v1002, %v1009
    %v1022 = vsel %vm932, %v1021, %v1014
    %v1023 = vsel %vm934, %v1022, %v1019
    %v1024 = vld [vmem:[%s808] sm:$0x1]
    %v1025 = vld [vmem:[%s817] sm:$0x1]
    %v1026 = vld [vmem:[%s826] sm:$0x1]
    %v1027 = vld [vmem:[%s835] sm:$0x1]
    %v1029 = vperm.slane %v1025, 0
    %1030 = vrot.lane.b32.xlu0 %v1029, 32
    %v1031 = vpop.permute.xlu0 %1030
    %v1034 = vperm.slane %v1026, 0
    %1035 = vrot.lane.b32.xlu0 %v1034, 64
    %v1036 = vpop.permute.xlu0 %1035
    %v1039 = vperm.slane %v1027, 0
    %1040 = vrot.lane.b32.xlu0 %v1039, 96
    %v1041 = vpop.permute.xlu0 %1040
    %v1043 = vsel %vm930, %v1024, %v1031
    %v1044 = vsel %vm932, %v1043, %v1036
    %v1045 = vsel %vm934, %v1044, %v1041
    %v1046 = vld [vmem:[%s844] sm:$0x1]
    %v1047 = vld [vmem:[%s853] sm:$0x1]
    %v1048 = vld [vmem:[%s862] sm:$0x1]
    %v1049 = vld [vmem:[%s871] sm:$0x1]
    %v1051 = vperm.slane %v1047, 0
    %1052 = vrot.lane.b32.xlu0 %v1051, 32
    %v1053 = vpop.permute.xlu0 %1052
    %v1056 = vperm.slane %v1048, 0
    %1057 = vrot.lane.b32.xlu0 %v1056, 64
    %v1058 = vpop.permute.xlu0 %1057
    %v1061 = vperm.slane %v1049, 0
    %1062 = vrot.lane.b32.xlu0 %v1061, 96
    %v1063 = vpop.permute.xlu0 %1062
    %v1065 = vsel %vm930, %v1046, %v1053
    %v1066 = vsel %vm932, %v1065, %v1058
    %v1067 = vsel %vm934, %v1066, %v1063
    %v1068 = vld [vmem:[%s880] sm:$0x1]
    %v1069 = vld [vmem:[%s889] sm:$0x1]
    %v1070 = vld [vmem:[%s898] sm:$0x1]
    %v1071 = vld [vmem:[%s907] sm:$0x1]
    %v1073 = vperm.slane %v1069, 0
    %1074 = vrot.lane.b32.xlu0 %v1073, 32
    %v1075 = vpop.permute.xlu0 %1074
    %v1078 = vperm.slane %v1070, 0
    %1079 = vrot.lane.b32.xlu0 %v1078, 64
    %v1080 = vpop.permute.xlu0 %1079
    %v1083 = vperm.slane %v1071, 0
    %1084 = vrot.lane.b32.xlu0 %v1083, 96
    %v1085 = vpop.permute.xlu0 %1084
    %v1087 = vsel %vm930, %v1068, %v1075
    %v1088 = vsel %vm932, %v1087, %v1080
    %v1089 = vsel %vm934, %v1088, %v1085
    %v1091 = vrot.slane %v957, 7
    %v1094 = vrot.slane %v979, 6
    %v1097 = vrot.slane %v1001, 5
    %v1100 = vrot.slane %v1023, 4
    %v1103 = vrot.slane %v1045, 3
    %v1106 = vrot.slane %v1067, 2
    %v1109 = vrot.slane %v1089, 1
    %vm1111 = vcmask 1040384
    %v1112 = vsel %vm1111, %v935, %v1091
    %vm1113 = vcmask 1041408
    %v1114 = vsel %vm1113, %v1112, %v1094
    %vm1115 = vcmask 1042432
    %v1116 = vsel %vm1115, %v1114, %v1097
    %vm1117 = vcmask 1043456
    %v1118 = vsel %vm1117, %v1116, %v1100
    %vm1119 = vcmask 1044480
    %v1120 = vsel %vm1119, %v1118, %v1103
    %vm1121 = vcmask 1045504
    %v1122 = vsel %vm1121, %v1120, %v1106
    %vm1123 = vcmask 1046528
    %v1124 = vsel %vm1123, %v1122, %v1109
    %1125 = vst [vmem:[#allocation5] sm:$0xff] %v1124
    // Predicated region
    $region130: #{tpu_custom_call.1} parent=1 // pred_check
      _
    $region131: #{tpu_custom_call.1} parent=1 // pred_check_branch
      %1127 = sbr.rel (0) target = $region133
    $region132: #{tpu_custom_call.1} parent=1 // pred_region
      %1129 = vsyncadd [#allocation6], 0
      %s1131 = sshll.u32 [#allocation5], 4
      %s1132 = int_to_ptr.vmem [resolvable:$true] %s1131
      %s1133 = sshll.u32 %s69, 4
      %s1134 = int_to_ptr.hbm [resolvable:$true] %s1133
      %1136 = dma.vmem_to_hbm [thread:$0]  %s1132, 128, %s1134, [#allocation6]
    $region133: #{tpu_custom_call.1} parent=1 // pred_fallthru
      _
    // Predicated region
    $region134: #{tpu_custom_call.1} parent=1 // pred_check
      _
    $region135: #{tpu_custom_call.1} parent=1 // pred_check_branch
      %1138 = sbr.rel (0) target = $region137
    $region136: #{tpu_custom_call.1} parent=1 // pred_region
      %1140 = dma.done [#allocation6], 128
    $region137: #{tpu_custom_call.1} parent=1 // pred_fallthru
      _
    %1141 = vsyncpa [#allocation6], 1

</llo_original>
